<compile_context>
chip_gen: v7x
topology: tpu7x:2x2x1
jax: 0.10.0
libtpu: 0.0.40
codegen_flags: <defaults>
</compile_context>

<pallas_src>
import math
import functools

import jax
import jax.numpy as jnp
from jax.experimental import pallas as pl
from jax.experimental.pallas import tpu as pltpu


def _layernorm(x, w, b, eps=1e-5):
    mu = jnp.mean(x, axis=-1, keepdims=True)
    var = jnp.mean((x - mu) ** 2, axis=-1, keepdims=True)
    return (x - mu) * jax.lax.rsqrt(var + eps) * w + b


def _erf(x):
    # Abramowitz & Stegun 7.1.26, |err| < 1.5e-7.  Keeps exact-erf GELU parity
    # with F.gelu while only using ops with guaranteed Mosaic lowerings.
    p = 0.3275911
    a1, a2, a3, a4, a5 = (0.254829592, -0.284496736, 1.421413741,
                          -1.453152027, 1.061405429)
    ax = jnp.abs(x)
    t = 1.0 / (1.0 + p * ax)
    poly = ((((a5 * t + a4) * t + a3) * t + a2) * t + a1) * t
    y = 1.0 - poly * jnp.exp(-(ax * ax))
    return jnp.where(x >= 0.0, y, -y)


def _gelu_exact(x):
    return 0.5 * x * (1.0 + _erf(x * (1.0 / math.sqrt(2.0))))


def block_kernel(x_ref, ln1w_ref, ln1b_ref,
                 wqkv_ref, bqkv_ref, wp_ref, bp_ref,
                 ln2w_ref, ln2b_ref, w1_ref, b1_ref, w2_ref, b2_ref,
                 y_ref, *maybe_att_ref,
                 n_head, block_b, seq_len, compute_dtype):
    att_ref = maybe_att_ref[0] if maybe_att_ref else None
    T = seq_len
    x = x_ref[...]                                    # (block_b*T, C) f32
    C = x.shape[-1]
    hd = C // n_head

    # ---- ln1 + fused QKV projection (1/sqrt(hd) pre-folded into Q cols) ----
    h = _layernorm(x, ln1w_ref[...], ln1b_ref[...])
    qkv = jnp.dot(h.astype(compute_dtype), wqkv_ref[...],
                  preferred_element_type=jnp.float32) + bqkv_ref[...]  # (bbT, 3C)

    # Additive causal mask from one 2-D iota pair; broadcast over the batch.
    row = jax.lax.broadcasted_iota(jnp.int32, (T, T), 0)
    col = jax.lax.broadcasted_iota(jnp.int32, (T, T), 1)
    neg_inf_mask = jnp.where(col <= row, 0.0, -jnp.inf).astype(jnp.float32)

    def head_slice(sec, hh):                          # -> (block_b, T, hd)
        c0 = sec * C + hh * hd                        # sec: 0=q, 1=k, 2=v
        return (qkv[:, c0:c0 + hd]
                .reshape(block_b, T, hd).astype(compute_dtype))

    # ---- causal attention: per-head loop, each dot batched over block_b ----
    # TODO(synk): flash-style KV tiling for large T (O(T^2) -> O(T*tile) VMEM).
    y_heads = []
    for hh in range(n_head):
        qh = head_slice(0, hh)
        kh = head_slice(1, hh)
        vh = head_slice(2, hh)
        logits = jax.lax.dot_general(
            qh, kh, (((2,), (2,)), ((0,), (0,))),
            preferred_element_type=jnp.float32)       # (bb, T, T) f32
        logits = logits + neg_inf_mask                # diag never masked -> safe
        att = jax.nn.softmax(logits, axis=-1)         # (bb, T, T) f32
        if att_ref is not None:
            att_ref[:, hh] = att
        yh = jax.lax.dot_general(
            att.astype(compute_dtype), vh, (((2,), (1,)), ((0,), (0,))),
            preferred_element_type=jnp.float32)       # (bb, T, hd) f32
        y_heads.append(yh.reshape(block_b * T, hd))

    # Lane-dense merge (no scatter scratch) feeding the projection matmul.
    y_merged = jnp.concatenate(y_heads, axis=-1)      # (bbT, C)

    y_att = jnp.dot(y_merged.astype(compute_dtype), wp_ref[...],
                    preferred_element_type=jnp.float32) + bp_ref[...]
    x1 = x + y_att                                    # residual 1

    # ---- ln2 + MLP (fc -> exact-erf GELU -> fc) ----
    h2 = _layernorm(x1, ln2w_ref[...], ln2b_ref[...])
    m = jnp.dot(h2.astype(compute_dtype), w1_ref[...],
                preferred_element_type=jnp.float32) + b1_ref[...]
    m = _gelu_exact(m)
    m = jnp.dot(m.astype(compute_dtype), w2_ref[...],
                preferred_element_type=jnp.float32) + b2_ref[...]
    y_ref[...] = x1 + m                               # residual 2


def transformer_block(x, params, n_head, *, block_b=None,
                      compute_dtype=jnp.bfloat16, return_att=True):
    """params: [ln1w, ln1b, wq, bq, wk, bk, wv, bv, wp, bp,
                ln2w, ln2b, w1, b1, w2, b2]  (linear W already (in, out))."""
    B, T, C = x.shape
    assert C % n_head == 0
    if block_b is None:
        # >= 2 grid steps by default: enables software pipelining everywhere
        # and lets the "parallel" axis shard across both v7x TensorCores.
        block_b = max(1, B // 2)
    assert B % block_b == 0
    nb = B // block_b
    if nb > 1:
        assert (block_b * T) % 8 == 0, "pad T so block rows are sublane-aligned"
    if block_b > 1:
        assert T % 8 == 0, "pad T to a multiple of 8 for in-kernel reshapes"

    (ln1w, ln1b, wq, bq, wk, bk, wv, bv, wp, bp,
     ln2w, ln2b, w1, b1, w2, b2) = params

    hd = C // n_head
    scale = 1.0 / math.sqrt(hd)
    # Fold 1/sqrt(hd) into the Q projection, fuse Q/K/V into one (C, 3C)
    # weight, and cast matmul weights to the MXU compute dtype.
    wqkv = jnp.concatenate([wq * scale, wk, wv], axis=1).astype(compute_dtype)
    bqkv = jnp.concatenate([bq * scale, bk, bv], axis=1).astype(jnp.float32)
    kparams = [ln1w.astype(jnp.float32), ln1b.astype(jnp.float32), wqkv, bqkv,
               wp.astype(compute_dtype), bp.astype(jnp.float32),
               ln2w.astype(jnp.float32), ln2b.astype(jnp.float32),
               w1.astype(compute_dtype), b1.astype(jnp.float32),
               w2.astype(compute_dtype), b2.astype(jnp.float32)]

    x2 = x.reshape(B * T, C).astype(jnp.float32)      # lane-dense 2-D slab

    def wspec(shape):
        nd = len(shape)
        return pl.BlockSpec(shape, lambda i, _nd=nd: (0,) * _nd)

    in_specs = [pl.BlockSpec((block_b * T, C), lambda i: (i, 0))]
    in_specs += [wspec(p.shape) for p in kparams]

    out_shape = [jax.ShapeDtypeStruct((B * T, C), jnp.float32)]
    out_specs = [pl.BlockSpec((block_b * T, C), lambda i: (i, 0))]
    if return_att:
        out_shape.append(jax.ShapeDtypeStruct((B, n_head, T, T), jnp.float32))
        out_specs.append(pl.BlockSpec((block_b, n_head, T, T),
                                      lambda i: (i, 0, 0, 0)))

    # Explicit scoped-VMEM hint sized from the per-step resident set
    # (double-buffered x/y blocks, att block, weights, qkv/mlp intermediates),
    # clamped to a range that is safe on v5e/v6e (128 MiB) and v7x (64 MiB).
    weight_bytes = sum(int(p.size) * p.dtype.itemsize for p in kparams)
    blk_bytes = (4 * block_b * T * C * 4
                 + (2 * block_b * n_head * T * T * 4 if return_att else 0)
                 + 2 * weight_bytes
                 + 8 * block_b * T * C * 4)
    vmem_limit = int(min(max(32 * 1024 * 1024, 2 * blk_bytes),
                         96 * 1024 * 1024))

    kernel = functools.partial(block_kernel, n_head=n_head, block_b=block_b,
                               seq_len=T, compute_dtype=compute_dtype)
    outs = pl.pallas_call(
        kernel,
        out_shape=tuple(out_shape),
        grid_spec=pltpu.PrefetchScalarGridSpec(
            num_scalar_prefetch=0,
            grid=(nb,),
            in_specs=in_specs,
            out_specs=out_specs),
        compiler_params=pltpu.CompilerParams(
            dimension_semantics=("parallel",),
            vmem_limit_bytes=vmem_limit),
    )(x2, *kparams)

    if return_att:
        y2, att = outs
        return y2.reshape(B, T, C), att
    return outs[0].reshape(B, T, C)


def reference_block(x, params, n_head):
    (ln1w, ln1b, wq, bq, wk, bk, wv, bv, wp, bp,
     ln2w, ln2b, w1, b1, w2, b2) = params

    def ln(t, w, b):
        mu = t.mean(-1, keepdims=True)
        var = ((t - mu) ** 2).mean(-1, keepdims=True)
        return (t - mu) / jnp.sqrt(var + 1e-5) * w + b

    B, T, C = x.shape
    hd = C // n_head
    h = ln(x, ln1w, ln1b)
    q = (h @ wq + bq).reshape(B, T, n_head, hd).transpose(0, 2, 1, 3)
    k = (h @ wk + bk).reshape(B, T, n_head, hd).transpose(0, 2, 1, 3)
    v = (h @ wv + bv).reshape(B, T, n_head, hd).transpose(0, 2, 1, 3)
    att = jnp.einsum('bhtd,bhsd->bhts', q, k) / math.sqrt(hd)
    mask = jnp.tril(jnp.ones((T, T), dtype=bool))
    att = jnp.where(mask, att, -jnp.inf)
    att = jax.nn.softmax(att, axis=-1)
    y = jnp.einsum('bhts,bhsd->bhtd', att, v).transpose(0, 2, 1, 3).reshape(B, T, C)
    x1 = x + (y @ wp + bp)
    h2 = ln(x1, ln2w, ln2b)
    m = jax.nn.gelu(h2 @ w1 + b1, approximate=False) @ w2 + b2
    return x1 + m, att


if __name__ == "__main__":
    # Small config consistent with the module (block_size == T).
    B, T, C, n_head = 2, 8, 32, 4

    key = jax.random.PRNGKey(0)
    ks = jax.random.split(key, 17)
    f32 = jnp.float32

    def w(k, shape, scale=0.05):
        return (scale * jax.random.normal(k, shape)).astype(f32)

    params = [
        1.0 + w(ks[0], (1, C)),      # ln1 gamma
        w(ks[1], (1, C)),            # ln1 beta
        w(ks[2], (C, C)),  w(ks[3], (1, C)),           # query W, b  (W is (in,out))
        w(ks[4], (C, C)),  w(ks[5], (1, C)),           # key   W, b
        w(ks[6], (C, C)),  w(ks[7], (1, C)),           # value W, b
        w(ks[8], (C, C)),  w(ks[9], (1, C)),           # proj  W, b
        1.0 + w(ks[10], (1, C)),     # ln2 gamma
        w(ks[11], (1, C)),           # ln2 beta
        w(ks[12], (C, 4 * C)), w(ks[13], (1, 4 * C)),  # mlp fc1
        w(ks[14], (4 * C, C)), w(ks[15], (1, C)),      # mlp fc2
    ]

    x = jax.random.normal(ks[16], (B, T, C), dtype=f32)

    y, att = transformer_block(x, params, n_head)      # bf16 MXU path
    jax.block_until_ready((y, att))

    y_ref, att_ref = reference_block(x, params, n_head)
    # bf16 matmul operands -> looser tolerance than pure-f32
    assert jnp.allclose(y, y_ref, rtol=2e-2, atol=2e-2), "output mismatch"
    assert jnp.allclose(att, att_ref, rtol=2e-2, atol=2e-2), "attn weights mismatch"

    print("KERNEL_OK")
</pallas_src>

<mosaic_0001>
module attributes {stable_mosaic.version = 11 : i64} {
  func.func @block_kernel(%arg0: i32, %arg1: memref<8x32xf32, #tpu.memory_space<vmem>>, %arg2: memref<1x32xf32, #tpu.memory_space<vmem>>, %arg3: memref<1x32xf32, #tpu.memory_space<vmem>>, %arg4: memref<32x96xbf16, #tpu.memory_space<vmem>>, %arg5: memref<1x96xf32, #tpu.memory_space<vmem>>, %arg6: memref<32x32xbf16, #tpu.memory_space<vmem>>, %arg7: memref<1x32xf32, #tpu.memory_space<vmem>>, %arg8: memref<1x32xf32, #tpu.memory_space<vmem>>, %arg9: memref<1x32xf32, #tpu.memory_space<vmem>>, %arg10: memref<32x128xbf16, #tpu.memory_space<vmem>>, %arg11: memref<1x128xf32, #tpu.memory_space<vmem>>, %arg12: memref<128x32xbf16, #tpu.memory_space<vmem>>, %arg13: memref<1x32xf32, #tpu.memory_space<vmem>>, %arg14: memref<8x32xf32, #tpu.memory_space<vmem>>, %arg15: memref<1x4x8x8xf32, #tpu.memory_space<vmem>>) attributes {dimension_semantics = [#tpu.dimension_semantics<parallel>], iteration_bounds = array<i64: 2>, scalar_prefetch = 0 : i64, scratch_operands = 0 : i64, tpu.core_type = #tpu.core_type<tc>, window_params = [{transform_indices = @transform_0, window_bounds = array<i64: 8, 32>}, {pipeline_mode = #tpu.pipeline_mode<synchronous>, transform_indices = @transform_1, window_bounds = array<i64: 1, 32>}, {pipeline_mode = #tpu.pipeline_mode<synchronous>, transform_indices = @transform_2, window_bounds = array<i64: 1, 32>}, {pipeline_mode = #tpu.pipeline_mode<synchronous>, transform_indices = @transform_3, window_bounds = array<i64: 32, 96>}, {pipeline_mode = #tpu.pipeline_mode<synchronous>, transform_indices = @transform_4, window_bounds = array<i64: 1, 96>}, {pipeline_mode = #tpu.pipeline_mode<synchronous>, transform_indices = @transform_5, window_bounds = array<i64: 32, 32>}, {pipeline_mode = #tpu.pipeline_mode<synchronous>, transform_indices = @transform_6, window_bounds = array<i64: 1, 32>}, {pipeline_mode = #tpu.pipeline_mode<synchronous>, transform_indices = @transform_7, window_bounds = array<i64: 1, 32>}, {pipeline_mode = #tpu.pipeline_mode<synchronous>, transform_indices = @transform_8, window_bounds = array<i64: 1, 32>}, {pipeline_mode = #tpu.pipeline_mode<synchronous>, transform_indices = @transform_9, window_bounds = array<i64: 32, 128>}, {pipeline_mode = #tpu.pipeline_mode<synchronous>, transform_indices = @transform_10, window_bounds = array<i64: 1, 128>}, {pipeline_mode = #tpu.pipeline_mode<synchronous>, transform_indices = @transform_11, window_bounds = array<i64: 128, 32>}, {pipeline_mode = #tpu.pipeline_mode<synchronous>, transform_indices = @transform_12, window_bounds = array<i64: 1, 32>}, {transform_indices = @transform_13, window_bounds = array<i64: 8, 32>}, {transform_indices = @transform_14, window_bounds = array<i64: 1, 4, 8, 8>}]} {
    %c0 = arith.constant 0 : index
    %c0_0 = arith.constant 0 : index
    %0 = vector.load %arg1[%c0, %c0_0] : memref<8x32xf32, #tpu.memory_space<vmem>>, vector<8x32xf32>
    %c0_1 = arith.constant 0 : index
    %c0_2 = arith.constant 0 : index
    %1 = vector.load %arg2[%c0_1, %c0_2] : memref<1x32xf32, #tpu.memory_space<vmem>>, vector<1x32xf32>
    %c0_3 = arith.constant 0 : index
    %c0_4 = arith.constant 0 : index
    %2 = vector.load %arg3[%c0_3, %c0_4] : memref<1x32xf32, #tpu.memory_space<vmem>>, vector<1x32xf32>
    %cst = arith.constant dense<0.000000e+00> : vector<8xf32>
    %3 = vector.multi_reduction <add>, %0, %cst [1] : vector<8x32xf32> to vector<8xf32>
    %4 = vector.shape_cast %3 : vector<8xf32> to vector<8x1xf32>
    %cst_5 = arith.constant 3.200000e+01 : f32
    %5 = vector.broadcast %cst_5 : f32 to vector<8x1xf32>
    %6 = arith.divf %4, %5 : vector<8x1xf32>
    %7 = vector.broadcast %6 : vector<8x1xf32> to vector<8x32xf32>
    %8 = arith.subf %0, %7 : vector<8x32xf32>
    %9 = arith.mulf %8, %8 : vector<8x32xf32>
    %cst_6 = arith.constant dense<0.000000e+00> : vector<8xf32>
    %10 = vector.multi_reduction <add>, %9, %cst_6 [1] : vector<8x32xf32> to vector<8xf32>
    %11 = vector.shape_cast %10 : vector<8xf32> to vector<8x1xf32>
    %cst_7 = arith.constant 3.200000e+01 : f32
    %12 = vector.broadcast %cst_7 : f32 to vector<8x1xf32>
    %13 = arith.divf %11, %12 : vector<8x1xf32>
    %14 = vector.broadcast %6 : vector<8x1xf32> to vector<8x32xf32>
    %15 = arith.subf %0, %14 : vector<8x32xf32>
    %cst_8 = arith.constant 9.99999974E-6 : f32
    %16 = vector.broadcast %cst_8 : f32 to vector<8x1xf32>
    %17 = arith.addf %13, %16 : vector<8x1xf32>
    %18 = math.rsqrt %17 : vector<8x1xf32>
    %19 = vector.broadcast %18 : vector<8x1xf32> to vector<8x32xf32>
    %20 = arith.mulf %15, %19 : vector<8x32xf32>
    %21 = vector.broadcast %1 : vector<1x32xf32> to vector<8x32xf32>
    %22 = arith.mulf %20, %21 : vector<8x32xf32>
    %23 = vector.broadcast %2 : vector<1x32xf32> to vector<8x32xf32>
    %24 = arith.addf %22, %23 : vector<8x32xf32>
    %25 = arith.truncf %24 : vector<8x32xf32> to vector<8x32xbf16>
    %c0_9 = arith.constant 0 : index
    %c0_10 = arith.constant 0 : index
    %26 = vector.load %arg4[%c0_9, %c0_10] : memref<32x96xbf16, #tpu.memory_space<vmem>>, vector<32x96xbf16>
    %cst_11 = arith.constant dense<0.000000e+00> : vector<8x96xf32>
    %27 = tpu.matmul %25, %26, %cst_11 {dimension_numbers = #tpu.dot_dimension_numbers<[1], [0], [0], [1], [0, 0, 1, 1], [], []>} : vector<8x32xbf16>, vector<32x96xbf16>, vector<8x96xf32> -> vector<8x96xf32>
    %c0_12 = arith.constant 0 : index
    %c0_13 = arith.constant 0 : index
    %28 = vector.load %arg5[%c0_12, %c0_13] : memref<1x96xf32, #tpu.memory_space<vmem>>, vector<1x96xf32>
    %29 = vector.broadcast %28 : vector<1x96xf32> to vector<8x96xf32>
    %30 = arith.addf %27, %29 : vector<8x96xf32>
    %31 = tpu.iota {dimensions = array<i32: 0>} : vector<8x8xi32>
    %32 = tpu.iota {dimensions = array<i32: 1>} : vector<8x8xi32>
    %33 = arith.cmpi sle, %32, %31 : vector<8x8xi32>
    %cst_14 = arith.constant 0.000000e+00 : f32
    %cst_15 = arith.constant 0xFF800000 : f32
    %34 = vector.broadcast %cst_14 : f32 to vector<8x8xf32>
    %35 = vector.broadcast %cst_15 : f32 to vector<8x8xf32>
    %36 = arith.select %33, %34, %35 : vector<8x8xi1>, vector<8x8xf32>
    %37 = vector.extract_strided_slice %30 {offsets = [0, 0], sizes = [8, 8], strides = [1, 1]} : vector<8x96xf32> to vector<8x8xf32>
    %38 = vector.shape_cast %37 : vector<8x8xf32> to vector<1x8x8xf32>
    %39 = arith.truncf %38 : vector<1x8x8xf32> to vector<1x8x8xbf16>
    %40 = vector.extract_strided_slice %30 {offsets = [0, 32], sizes = [8, 8], strides = [1, 1]} : vector<8x96xf32> to vector<8x8xf32>
    %41 = vector.shape_cast %40 : vector<8x8xf32> to vector<1x8x8xf32>
    %42 = arith.truncf %41 : vector<1x8x8xf32> to vector<1x8x8xbf16>
    %43 = vector.extract_strided_slice %30 {offsets = [0, 64], sizes = [8, 8], strides = [1, 1]} : vector<8x96xf32> to vector<8x8xf32>
    %44 = vector.shape_cast %43 : vector<8x8xf32> to vector<1x8x8xf32>
    %45 = arith.truncf %44 : vector<1x8x8xf32> to vector<1x8x8xbf16>
    %cst_16 = arith.constant dense<0.000000e+00> : vector<1x8x8xf32>
    %46 = tpu.matmul %39, %42, %cst_16 {dimension_numbers = #tpu.dot_dimension_numbers<[2], [2], [1], [1], [0, 0, 0, 1, 1, 1], [0], [0]>} : vector<1x8x8xbf16>, vector<1x8x8xbf16>, vector<1x8x8xf32> -> vector<1x8x8xf32>
    %47 = vector.shape_cast %36 : vector<8x8xf32> to vector<1x8x8xf32>
    %48 = arith.addf %46, %47 : vector<1x8x8xf32>
    %cst_17 = arith.constant dense<0xFF800000> : vector<1x8xf32>
    %49 = vector.multi_reduction <maximumf>, %48, %cst_17 [2] : vector<1x8x8xf32> to vector<1x8xf32>
    %cst_18 = arith.constant 0xFF800000 : f32
    %50 = vector.broadcast %cst_18 : f32 to vector<1x8xf32>
    %51 = arith.maximumf %50, %49 : vector<1x8xf32>
    %52 = vector.shape_cast %51 : vector<1x8xf32> to vector<1x8x1xf32>
    %53 = vector.broadcast %52 : vector<1x8x1xf32> to vector<1x8x8xf32>
    %54 = arith.subf %48, %53 : vector<1x8x8xf32>
    %55 = math.exp %54 : vector<1x8x8xf32>
    %cst_19 = arith.constant dense<0.000000e+00> : vector<1x8xf32>
    %56 = vector.multi_reduction <add>, %55, %cst_19 [2] : vector<1x8x8xf32> to vector<1x8xf32>
    %57 = vector.shape_cast %56 : vector<1x8xf32> to vector<1x8x1xf32>
    %58 = vector.broadcast %57 : vector<1x8x1xf32> to vector<1x8x8xf32>
    %59 = arith.divf %55, %58 : vector<1x8x8xf32>
    %c0_20 = arith.constant 0 : index
    %c0_21 = arith.constant 0 : index
    %c0_22 = arith.constant 0 : index
    %c0_23 = arith.constant 0 : index
    %60 = vector.load %arg15[%c0_20, %c0_21, %c0_22, %c0_23] : memref<1x4x8x8xf32, #tpu.memory_space<vmem>>, vector<1x1x8x8xf32>
    %61 = vector.shape_cast %60 : vector<1x1x8x8xf32> to vector<1x8x8xf32>
    %62 = vector.shape_cast %59 : vector<1x8x8xf32> to vector<1x1x8x8xf32>
    tpu.vector_store %arg15[%c0_20, %c0_21, %c0_22, %c0_23], %62 {strides = array<i32>} : memref<1x4x8x8xf32, #tpu.memory_space<vmem>>, vector<1x1x8x8xf32>,
    %63 = arith.truncf %59 : vector<1x8x8xf32> to vector<1x8x8xbf16>
    %cst_24 = arith.constant dense<0.000000e+00> : vector<1x8x8xf32>
    %64 = tpu.matmul %63, %45, %cst_24 {dimension_numbers = #tpu.dot_dimension_numbers<[2], [1], [1], [2], [0, 0, 0, 1, 1, 2], [0], [0]>} : vector<1x8x8xbf16>, vector<1x8x8xbf16>, vector<1x8x8xf32> -> vector<1x8x8xf32>
    %65 = vector.shape_cast %64 : vector<1x8x8xf32> to vector<8x8xf32>
    %66 = vector.extract_strided_slice %30 {offsets = [0, 8], sizes = [8, 8], strides = [1, 1]} : vector<8x96xf32> to vector<8x8xf32>
    %67 = vector.shape_cast %66 : vector<8x8xf32> to vector<1x8x8xf32>
    %68 = arith.truncf %67 : vector<1x8x8xf32> to vector<1x8x8xbf16>
    %69 = vector.extract_strided_slice %30 {offsets = [0, 40], sizes = [8, 8], strides = [1, 1]} : vector<8x96xf32> to vector<8x8xf32>
    %70 = vector.shape_cast %69 : vector<8x8xf32> to vector<1x8x8xf32>
    %71 = arith.truncf %70 : vector<1x8x8xf32> to vector<1x8x8xbf16>
    %72 = vector.extract_strided_slice %30 {offsets = [0, 72], sizes = [8, 8], strides = [1, 1]} : vector<8x96xf32> to vector<8x8xf32>
    %73 = vector.shape_cast %72 : vector<8x8xf32> to vector<1x8x8xf32>
    %74 = arith.truncf %73 : vector<1x8x8xf32> to vector<1x8x8xbf16>
    %cst_25 = arith.constant dense<0.000000e+00> : vector<1x8x8xf32>
    %75 = tpu.matmul %68, %71, %cst_25 {dimension_numbers = #tpu.dot_dimension_numbers<[2], [2], [1], [1], [0, 0, 0, 1, 1, 1], [0], [0]>} : vector<1x8x8xbf16>, vector<1x8x8xbf16>, vector<1x8x8xf32> -> vector<1x8x8xf32>
    %76 = vector.shape_cast %36 : vector<8x8xf32> to vector<1x8x8xf32>
    %77 = arith.addf %75, %76 : vector<1x8x8xf32>
    %cst_26 = arith.constant dense<0xFF800000> : vector<1x8xf32>
    %78 = vector.multi_reduction <maximumf>, %77, %cst_26 [2] : vector<1x8x8xf32> to vector<1x8xf32>
    %cst_27 = arith.constant 0xFF800000 : f32
    %79 = vector.broadcast %cst_27 : f32 to vector<1x8xf32>
    %80 = arith.maximumf %79, %78 : vector<1x8xf32>
    %81 = vector.shape_cast %80 : vector<1x8xf32> to vector<1x8x1xf32>
    %82 = vector.broadcast %81 : vector<1x8x1xf32> to vector<1x8x8xf32>
    %83 = arith.subf %77, %82 : vector<1x8x8xf32>
    %84 = math.exp %83 : vector<1x8x8xf32>
    %cst_28 = arith.constant dense<0.000000e+00> : vector<1x8xf32>
    %85 = vector.multi_reduction <add>, %84, %cst_28 [2] : vector<1x8x8xf32> to vector<1x8xf32>
    %86 = vector.shape_cast %85 : vector<1x8xf32> to vector<1x8x1xf32>
    %87 = vector.broadcast %86 : vector<1x8x1xf32> to vector<1x8x8xf32>
    %88 = arith.divf %84, %87 : vector<1x8x8xf32>
    %c0_29 = arith.constant 0 : index
    %c1 = arith.constant 1 : index
    %c0_30 = arith.constant 0 : index
    %c0_31 = arith.constant 0 : index
    %89 = vector.load %arg15[%c0_29, %c1, %c0_30, %c0_31] : memref<1x4x8x8xf32, #tpu.memory_space<vmem>>, vector<1x1x8x8xf32>
    %90 = vector.shape_cast %89 : vector<1x1x8x8xf32> to vector<1x8x8xf32>
    %91 = vector.shape_cast %88 : vector<1x8x8xf32> to vector<1x1x8x8xf32>
    tpu.vector_store %arg15[%c0_29, %c1, %c0_30, %c0_31], %91 {strides = array<i32>} : memref<1x4x8x8xf32, #tpu.memory_space<vmem>>, vector<1x1x8x8xf32>,
    %92 = arith.truncf %88 : vector<1x8x8xf32> to vector<1x8x8xbf16>
    %cst_32 = arith.constant dense<0.000000e+00> : vector<1x8x8xf32>
    %93 = tpu.matmul %92, %74, %cst_32 {dimension_numbers = #tpu.dot_dimension_numbers<[2], [1], [1], [2], [0, 0, 0, 1, 1, 2], [0], [0]>} : vector<1x8x8xbf16>, vector<1x8x8xbf16>, vector<1x8x8xf32> -> vector<1x8x8xf32>
    %94 = vector.shape_cast %93 : vector<1x8x8xf32> to vector<8x8xf32>
    %95 = vector.extract_strided_slice %30 {offsets = [0, 16], sizes = [8, 8], strides = [1, 1]} : vector<8x96xf32> to vector<8x8xf32>
    %96 = vector.shape_cast %95 : vector<8x8xf32> to vector<1x8x8xf32>
    %97 = arith.truncf %96 : vector<1x8x8xf32> to vector<1x8x8xbf16>
    %98 = vector.extract_strided_slice %30 {offsets = [0, 48], sizes = [8, 8], strides = [1, 1]} : vector<8x96xf32> to vector<8x8xf32>
    %99 = vector.shape_cast %98 : vector<8x8xf32> to vector<1x8x8xf32>
    %100 = arith.truncf %99 : vector<1x8x8xf32> to vector<1x8x8xbf16>
    %101 = vector.extract_strided_slice %30 {offsets = [0, 80], sizes = [8, 8], strides = [1, 1]} : vector<8x96xf32> to vector<8x8xf32>
    %102 = vector.shape_cast %101 : vector<8x8xf32> to vector<1x8x8xf32>
    %103 = arith.truncf %102 : vector<1x8x8xf32> to vector<1x8x8xbf16>
    %cst_33 = arith.constant dense<0.000000e+00> : vector<1x8x8xf32>
    %104 = tpu.matmul %97, %100, %cst_33 {dimension_numbers = #tpu.dot_dimension_numbers<[2], [2], [1], [1], [0, 0, 0, 1, 1, 1], [0], [0]>} : vector<1x8x8xbf16>, vector<1x8x8xbf16>, vector<1x8x8xf32> -> vector<1x8x8xf32>
    %105 = vector.shape_cast %36 : vector<8x8xf32> to vector<1x8x8xf32>
    %106 = arith.addf %104, %105 : vector<1x8x8xf32>
    %cst_34 = arith.constant dense<0xFF800000> : vector<1x8xf32>
    %107 = vector.multi_reduction <maximumf>, %106, %cst_34 [2] : vector<1x8x8xf32> to vector<1x8xf32>
    %cst_35 = arith.constant 0xFF800000 : f32
    %108 = vector.broadcast %cst_35 : f32 to vector<1x8xf32>
    %109 = arith.maximumf %108, %107 : vector<1x8xf32>
    %110 = vector.shape_cast %109 : vector<1x8xf32> to vector<1x8x1xf32>
    %111 = vector.broadcast %110 : vector<1x8x1xf32> to vector<1x8x8xf32>
    %112 = arith.subf %106, %111 : vector<1x8x8xf32>
    %113 = math.exp %112 : vector<1x8x8xf32>
    %cst_36 = arith.constant dense<0.000000e+00> : vector<1x8xf32>
    %114 = vector.multi_reduction <add>, %113, %cst_36 [2] : vector<1x8x8xf32> to vector<1x8xf32>
    %115 = vector.shape_cast %114 : vector<1x8xf32> to vector<1x8x1xf32>
    %116 = vector.broadcast %115 : vector<1x8x1xf32> to vector<1x8x8xf32>
    %117 = arith.divf %113, %116 : vector<1x8x8xf32>
    %c0_37 = arith.constant 0 : index
    %c2 = arith.constant 2 : index
    %c0_38 = arith.constant 0 : index
    %c0_39 = arith.constant 0 : index
    %118 = vector.load %arg15[%c0_37, %c2, %c0_38, %c0_39] : memref<1x4x8x8xf32, #tpu.memory_space<vmem>>, vector<1x1x8x8xf32>
    %119 = vector.shape_cast %118 : vector<1x1x8x8xf32> to vector<1x8x8xf32>
    %120 = vector.shape_cast %117 : vector<1x8x8xf32> to vector<1x1x8x8xf32>
    tpu.vector_store %arg15[%c0_37, %c2, %c0_38, %c0_39], %120 {strides = array<i32>} : memref<1x4x8x8xf32, #tpu.memory_space<vmem>>, vector<1x1x8x8xf32>,
    %121 = arith.truncf %117 : vector<1x8x8xf32> to vector<1x8x8xbf16>
    %cst_40 = arith.constant dense<0.000000e+00> : vector<1x8x8xf32>
    %122 = tpu.matmul %121, %103, %cst_40 {dimension_numbers = #tpu.dot_dimension_numbers<[2], [1], [1], [2], [0, 0, 0, 1, 1, 2], [0], [0]>} : vector<1x8x8xbf16>, vector<1x8x8xbf16>, vector<1x8x8xf32> -> vector<1x8x8xf32>
    %123 = vector.shape_cast %122 : vector<1x8x8xf32> to vector<8x8xf32>
    %124 = vector.extract_strided_slice %30 {offsets = [0, 24], sizes = [8, 8], strides = [1, 1]} : vector<8x96xf32> to vector<8x8xf32>
    %125 = vector.shape_cast %124 : vector<8x8xf32> to vector<1x8x8xf32>
    %126 = arith.truncf %125 : vector<1x8x8xf32> to vector<1x8x8xbf16>
    %127 = vector.extract_strided_slice %30 {offsets = [0, 56], sizes = [8, 8], strides = [1, 1]} : vector<8x96xf32> to vector<8x8xf32>
    %128 = vector.shape_cast %127 : vector<8x8xf32> to vector<1x8x8xf32>
    %129 = arith.truncf %128 : vector<1x8x8xf32> to vector<1x8x8xbf16>
    %130 = vector.extract_strided_slice %30 {offsets = [0, 88], sizes = [8, 8], strides = [1, 1]} : vector<8x96xf32> to vector<8x8xf32>
    %131 = vector.shape_cast %130 : vector<8x8xf32> to vector<1x8x8xf32>
    %132 = arith.truncf %131 : vector<1x8x8xf32> to vector<1x8x8xbf16>
    %cst_41 = arith.constant dense<0.000000e+00> : vector<1x8x8xf32>
    %133 = tpu.matmul %126, %129, %cst_41 {dimension_numbers = #tpu.dot_dimension_numbers<[2], [2], [1], [1], [0, 0, 0, 1, 1, 1], [0], [0]>} : vector<1x8x8xbf16>, vector<1x8x8xbf16>, vector<1x8x8xf32> -> vector<1x8x8xf32>
    %134 = vector.shape_cast %36 : vector<8x8xf32> to vector<1x8x8xf32>
    %135 = arith.addf %133, %134 : vector<1x8x8xf32>
    %cst_42 = arith.constant dense<0xFF800000> : vector<1x8xf32>
    %136 = vector.multi_reduction <maximumf>, %135, %cst_42 [2] : vector<1x8x8xf32> to vector<1x8xf32>
    %cst_43 = arith.constant 0xFF800000 : f32
    %137 = vector.broadcast %cst_43 : f32 to vector<1x8xf32>
    %138 = arith.maximumf %137, %136 : vector<1x8xf32>
    %139 = vector.shape_cast %138 : vector<1x8xf32> to vector<1x8x1xf32>
    %140 = vector.broadcast %139 : vector<1x8x1xf32> to vector<1x8x8xf32>
    %141 = arith.subf %135, %140 : vector<1x8x8xf32>
    %142 = math.exp %141 : vector<1x8x8xf32>
    %cst_44 = arith.constant dense<0.000000e+00> : vector<1x8xf32>
    %143 = vector.multi_reduction <add>, %142, %cst_44 [2] : vector<1x8x8xf32> to vector<1x8xf32>
    %144 = vector.shape_cast %143 : vector<1x8xf32> to vector<1x8x1xf32>
    %145 = vector.broadcast %144 : vector<1x8x1xf32> to vector<1x8x8xf32>
    %146 = arith.divf %142, %145 : vector<1x8x8xf32>
    %c0_45 = arith.constant 0 : index
    %c3 = arith.constant 3 : index
    %c0_46 = arith.constant 0 : index
    %c0_47 = arith.constant 0 : index
    %147 = vector.load %arg15[%c0_45, %c3, %c0_46, %c0_47] : memref<1x4x8x8xf32, #tpu.memory_space<vmem>>, vector<1x1x8x8xf32>
    %148 = vector.shape_cast %147 : vector<1x1x8x8xf32> to vector<1x8x8xf32>
    %149 = vector.shape_cast %146 : vector<1x8x8xf32> to vector<1x1x8x8xf32>
    tpu.vector_store %arg15[%c0_45, %c3, %c0_46, %c0_47], %149 {strides = array<i32>} : memref<1x4x8x8xf32, #tpu.memory_space<vmem>>, vector<1x1x8x8xf32>,
    %150 = arith.truncf %146 : vector<1x8x8xf32> to vector<1x8x8xbf16>
    %cst_48 = arith.constant dense<0.000000e+00> : vector<1x8x8xf32>
    %151 = tpu.matmul %150, %132, %cst_48 {dimension_numbers = #tpu.dot_dimension_numbers<[2], [1], [1], [2], [0, 0, 0, 1, 1, 2], [0], [0]>} : vector<1x8x8xbf16>, vector<1x8x8xbf16>, vector<1x8x8xf32> -> vector<1x8x8xf32>
    %152 = vector.shape_cast %151 : vector<1x8x8xf32> to vector<8x8xf32>
    %153 = tpu.concatenate %65, %94, %123, %152 in 1 : vector<8x8xf32>, vector<8x8xf32>, vector<8x8xf32>, vector<8x8xf32> -> vector<8x32xf32>
    %154 = arith.truncf %153 : vector<8x32xf32> to vector<8x32xbf16>
    %c0_49 = arith.constant 0 : index
    %c0_50 = arith.constant 0 : index
    %155 = vector.load %arg6[%c0_49, %c0_50] : memref<32x32xbf16, #tpu.memory_space<vmem>>, vector<32x32xbf16>
    %cst_51 = arith.constant dense<0.000000e+00> : vector<8x32xf32>
    %156 = tpu.matmul %154, %155, %cst_51 {dimension_numbers = #tpu.dot_dimension_numbers<[1], [0], [0], [1], [0, 0, 1, 1], [], []>} : vector<8x32xbf16>, vector<32x32xbf16>, vector<8x32xf32> -> vector<8x32xf32>
    %c0_52 = arith.constant 0 : index
    %c0_53 = arith.constant 0 : index
    %157 = vector.load %arg7[%c0_52, %c0_53] : memref<1x32xf32, #tpu.memory_space<vmem>>, vector<1x32xf32>
    %158 = vector.broadcast %157 : vector<1x32xf32> to vector<8x32xf32>
    %159 = arith.addf %156, %158 : vector<8x32xf32>
    %160 = arith.addf %0, %159 : vector<8x32xf32>
    %c0_54 = arith.constant 0 : index
    %c0_55 = arith.constant 0 : index
    %161 = vector.load %arg8[%c0_54, %c0_55] : memref<1x32xf32, #tpu.memory_space<vmem>>, vector<1x32xf32>
    %c0_56 = arith.constant 0 : index
    %c0_57 = arith.constant 0 : index
    %162 = vector.load %arg9[%c0_56, %c0_57] : memref<1x32xf32, #tpu.memory_space<vmem>>, vector<1x32xf32>
    %cst_58 = arith.constant dense<0.000000e+00> : vector<8xf32>
    %163 = vector.multi_reduction <add>, %160, %cst_58 [1] : vector<8x32xf32> to vector<8xf32>
    %164 = vector.shape_cast %163 : vector<8xf32> to vector<8x1xf32>
    %cst_59 = arith.constant 3.200000e+01 : f32
    %165 = vector.broadcast %cst_59 : f32 to vector<8x1xf32>
    %166 = arith.divf %164, %165 : vector<8x1xf32>
    %167 = vector.broadcast %166 : vector<8x1xf32> to vector<8x32xf32>
    %168 = arith.subf %160, %167 : vector<8x32xf32>
    %169 = arith.mulf %168, %168 : vector<8x32xf32>
    %cst_60 = arith.constant dense<0.000000e+00> : vector<8xf32>
    %170 = vector.multi_reduction <add>, %169, %cst_60 [1] : vector<8x32xf32> to vector<8xf32>
    %171 = vector.shape_cast %170 : vector<8xf32> to vector<8x1xf32>
    %cst_61 = arith.constant 3.200000e+01 : f32
    %172 = vector.broadcast %cst_61 : f32 to vector<8x1xf32>
    %173 = arith.divf %171, %172 : vector<8x1xf32>
    %174 = vector.broadcast %166 : vector<8x1xf32> to vector<8x32xf32>
    %175 = arith.subf %160, %174 : vector<8x32xf32>
    %cst_62 = arith.constant 9.99999974E-6 : f32
    %176 = vector.broadcast %cst_62 : f32 to vector<8x1xf32>
    %177 = arith.addf %173, %176 : vector<8x1xf32>
    %178 = math.rsqrt %177 : vector<8x1xf32>
    %179 = vector.broadcast %178 : vector<8x1xf32> to vector<8x32xf32>
    %180 = arith.mulf %175, %179 : vector<8x32xf32>
    %181 = vector.broadcast %161 : vector<1x32xf32> to vector<8x32xf32>
    %182 = arith.mulf %180, %181 : vector<8x32xf32>
    %183 = vector.broadcast %162 : vector<1x32xf32> to vector<8x32xf32>
    %184 = arith.addf %182, %183 : vector<8x32xf32>
    %185 = arith.truncf %184 : vector<8x32xf32> to vector<8x32xbf16>
    %c0_63 = arith.constant 0 : index
    %c0_64 = arith.constant 0 : index
    %186 = vector.load %arg10[%c0_63, %c0_64] : memref<32x128xbf16, #tpu.memory_space<vmem>>, vector<32x128xbf16>
    %cst_65 = arith.constant dense<0.000000e+00> : vector<8x128xf32>
    %187 = tpu.matmul %185, %186, %cst_65 {dimension_numbers = #tpu.dot_dimension_numbers<[1], [0], [0], [1], [0, 0, 1, 1], [], []>} : vector<8x32xbf16>, vector<32x128xbf16>, vector<8x128xf32> -> vector<8x128xf32>
    %c0_66 = arith.constant 0 : index
    %c0_67 = arith.constant 0 : index
    %188 = vector.load %arg11[%c0_66, %c0_67] : memref<1x128xf32, #tpu.memory_space<vmem>>, vector<1x128xf32>
    %189 = vector.broadcast %188 : vector<1x128xf32> to vector<8x128xf32>
    %190 = arith.addf %187, %189 : vector<8x128xf32>
    %cst_68 = arith.constant 5.000000e-01 : f32
    %191 = vector.broadcast %cst_68 : f32 to vector<8x128xf32>
    %192 = arith.mulf %191, %190 : vector<8x128xf32>
    %cst_69 = arith.constant 0.707106769 : f32
    %193 = vector.broadcast %cst_69 : f32 to vector<8x128xf32>
    %194 = arith.mulf %190, %193 : vector<8x128xf32>
    %195 = math.absf %194 : vector<8x128xf32>
    %cst_70 = arith.constant 0.327591091 : f32
    %196 = vector.broadcast %cst_70 : f32 to vector<8x128xf32>
    %197 = arith.mulf %196, %195 : vector<8x128xf32>
    %cst_71 = arith.constant 1.000000e+00 : f32
    %198 = vector.broadcast %cst_71 : f32 to vector<8x128xf32>
    %199 = arith.addf %198, %197 : vector<8x128xf32>
    %cst_72 = arith.constant 1.000000e+00 : f32
    %200 = vector.broadcast %cst_72 : f32 to vector<8x128xf32>
    %201 = arith.divf %200, %199 : vector<8x128xf32>
    %cst_73 = arith.constant 1.06140542 : f32
    %202 = vector.broadcast %cst_73 : f32 to vector<8x128xf32>
    %203 = arith.mulf %202, %201 : vector<8x128xf32>
    %cst_74 = arith.constant -1.45315206 : f32
    %204 = vector.broadcast %cst_74 : f32 to vector<8x128xf32>
    %205 = arith.addf %203, %204 : vector<8x128xf32>
    %206 = arith.mulf %205, %201 : vector<8x128xf32>
    %cst_75 = arith.constant 1.42141378 : f32
    %207 = vector.broadcast %cst_75 : f32 to vector<8x128xf32>
    %208 = arith.addf %206, %207 : vector<8x128xf32>
    %209 = arith.mulf %208, %201 : vector<8x128xf32>
    %cst_76 = arith.constant -0.284496725 : f32
    %210 = vector.broadcast %cst_76 : f32 to vector<8x128xf32>
    %211 = arith.addf %209, %210 : vector<8x128xf32>
    %212 = arith.mulf %211, %201 : vector<8x128xf32>
    %cst_77 = arith.constant 0.254829586 : f32
    %213 = vector.broadcast %cst_77 : f32 to vector<8x128xf32>
    %214 = arith.addf %212, %213 : vector<8x128xf32>
    %215 = arith.mulf %214, %201 : vector<8x128xf32>
    %216 = arith.mulf %195, %195 : vector<8x128xf32>
    %cst_78 = arith.constant 0.000000e+00 : f32
    %217 = vector.broadcast %cst_78 : f32 to vector<8x128xf32>
    %218 = arith.subf %217, %216 : vector<8x128xf32>
    %219 = math.exp %218 : vector<8x128xf32>
    %220 = arith.mulf %215, %219 : vector<8x128xf32>
    %cst_79 = arith.constant 1.000000e+00 : f32
    %221 = vector.broadcast %cst_79 : f32 to vector<8x128xf32>
    %222 = arith.subf %221, %220 : vector<8x128xf32>
    %cst_80 = arith.constant 0.000000e+00 : f32
    %223 = vector.broadcast %cst_80 : f32 to vector<8x128xf32>
    %224 = arith.cmpf oge, %194, %223 : vector<8x128xf32>
    %cst_81 = arith.constant 0.000000e+00 : f32
    %225 = vector.broadcast %cst_81 : f32 to vector<8x128xf32>
    %226 = arith.subf %225, %222 : vector<8x128xf32>
    %227 = arith.select %224, %222, %226 : vector<8x128xi1>, vector<8x128xf32>
    %cst_82 = arith.constant 1.000000e+00 : f32
    %228 = vector.broadcast %cst_82 : f32 to vector<8x128xf32>
    %229 = arith.addf %228, %227 : vector<8x128xf32>
    %230 = arith.mulf %192, %229 : vector<8x128xf32>
    %231 = arith.truncf %230 : vector<8x128xf32> to vector<8x128xbf16>
    %c0_83 = arith.constant 0 : index
    %c0_84 = arith.constant 0 : index
    %232 = vector.load %arg12[%c0_83, %c0_84] : memref<128x32xbf16, #tpu.memory_space<vmem>>, vector<128x32xbf16>
    %cst_85 = arith.constant dense<0.000000e+00> : vector<8x32xf32>
    %233 = tpu.matmul %231, %232, %cst_85 {dimension_numbers = #tpu.dot_dimension_numbers<[1], [0], [0], [1], [0, 0, 1, 1], [], []>} : vector<8x128xbf16>, vector<128x32xbf16>, vector<8x32xf32> -> vector<8x32xf32>
    %c0_86 = arith.constant 0 : index
    %c0_87 = arith.constant 0 : index
    %234 = vector.load %arg13[%c0_86, %c0_87] : memref<1x32xf32, #tpu.memory_space<vmem>>, vector<1x32xf32>
    %235 = vector.broadcast %234 : vector<1x32xf32> to vector<8x32xf32>
    %236 = arith.addf %233, %235 : vector<8x32xf32>
    %237 = arith.addf %160, %236 : vector<8x32xf32>
    %c0_88 = arith.constant 0 : index
    %c0_89 = arith.constant 0 : index
    %238 = vector.load %arg14[%c0_88, %c0_89] : memref<8x32xf32, #tpu.memory_space<vmem>>, vector<8x32xf32>
    tpu.vector_store %arg14[%c0_88, %c0_89], %237 {strides = array<i32>} : memref<8x32xf32, #tpu.memory_space<vmem>>, vector<8x32xf32>,
    return
  }
  func.func @transform_0(%arg0: i32) -> (i32, i32) {
    %c0_i32 = arith.constant 0 : i32
    %c0_i32_0 = arith.constant 0 : i32
    return %arg0, %c0_i32 : i32, i32
  }
  func.func @transform_1(%arg0: i32) -> (i32, i32) {
    %c0_i32 = arith.constant 0 : i32
    %c0_i32_0 = arith.constant 0 : i32
    %c0_i32_1 = arith.constant 0 : i32
    return %c0_i32, %c0_i32_0 : i32, i32
  }
  func.func @transform_2(%arg0: i32) -> (i32, i32) {
    %c0_i32 = arith.constant 0 : i32
    %c0_i32_0 = arith.constant 0 : i32
    %c0_i32_1 = arith.constant 0 : i32
    return %c0_i32, %c0_i32_0 : i32, i32
  }
  func.func @transform_3(%arg0: i32) -> (i32, i32) {
    %c0_i32 = arith.constant 0 : i32
    %c0_i32_0 = arith.constant 0 : i32
    %c0_i32_1 = arith.constant 0 : i32
    return %c0_i32, %c0_i32_0 : i32, i32
  }
  func.func @transform_4(%arg0: i32) -> (i32, i32) {
    %c0_i32 = arith.constant 0 : i32
    %c0_i32_0 = arith.constant 0 : i32
    %c0_i32_1 = arith.constant 0 : i32
    return %c0_i32, %c0_i32_0 : i32, i32
  }
  func.func @transform_5(%arg0: i32) -> (i32, i32) {
    %c0_i32 = arith.constant 0 : i32
    %c0_i32_0 = arith.constant 0 : i32
    %c0_i32_1 = arith.constant 0 : i32
    return %c0_i32, %c0_i32_0 : i32, i32
  }
  func.func @transform_6(%arg0: i32) -> (i32, i32) {
    %c0_i32 = arith.constant 0 : i32
    %c0_i32_0 = arith.constant 0 : i32
    %c0_i32_1 = arith.constant 0 : i32
    return %c0_i32, %c0_i32_0 : i32, i32
  }
  func.func @transform_7(%arg0: i32) -> (i32, i32) {
    %c0_i32 = arith.constant 0 : i32
    %c0_i32_0 = arith.constant 0 : i32
    %c0_i32_1 = arith.constant 0 : i32
    return %c0_i32, %c0_i32_0 : i32, i32
  }
  func.func @transform_8(%arg0: i32) -> (i32, i32) {
    %c0_i32 = arith.constant 0 : i32
    %c0_i32_0 = arith.constant 0 : i32
    %c0_i32_1 = arith.constant 0 : i32
    return %c0_i32, %c0_i32_0 : i32, i32
  }
  func.func @transform_9(%arg0: i32) -> (i32, i32) {
    %c0_i32 = arith.constant 0 : i32
    %c0_i32_0 = arith.constant 0 : i32
    %c0_i32_1 = arith.constant 0 : i32
    return %c0_i32, %c0_i32_0 : i32, i32
  }
  func.func @transform_10(%arg0: i32) -> (i32, i32) {
    %c0_i32 = arith.constant 0 : i32
    %c0_i32_0 = arith.constant 0 : i32
    %c0_i32_1 = arith.constant 0 : i32
    return %c0_i32, %c0_i32_0 : i32, i32
  }
  func.func @transform_11(%arg0: i32) -> (i32, i32) {
    %c0_i32 = arith.constant 0 : i32
    %c0_i32_0 = arith.constant 0 : i32
    %c0_i32_1 = arith.constant 0 : i32
    return %c0_i32, %c0_i32_0 : i32, i32
  }
  func.func @transform_12(%arg0: i32) -> (i32, i32) {
    %c0_i32 = arith.constant 0 : i32
    %c0_i32_0 = arith.constant 0 : i32
    %c0_i32_1 = arith.constant 0 : i32
    return %c0_i32, %c0_i32_0 : i32, i32
  }
  func.func @transform_13(%arg0: i32) -> (i32, i32) {
    %c0_i32 = arith.constant 0 : i32
    %c0_i32_0 = arith.constant 0 : i32
    return %arg0, %c0_i32 : i32, i32
  }
  func.func @transform_14(%arg0: i32) -> (i32, i32, i32, i32) {
    %c0_i32 = arith.constant 0 : i32
    %c0_i32_0 = arith.constant 0 : i32
    %c0_i32_1 = arith.constant 0 : i32
    %c0_i32_2 = arith.constant 0 : i32
    return %arg0, %c0_i32, %c0_i32_0, %c0_i32_1 : i32, i32, i32, i32
  }
}

</mosaic_0001>

<llo_original>
// kernel: tpu_custom_call.1
$region0: #{tpu_custom_call.1}
  #allocation0 [shape = 'u32[]', space=smem, size = 0x4, offset = 0x4, fixed_abs, tag = 'smem constant byte address 0x4 - core index']
  #allocation1 [shape = 'u32[144,128]{1,0:T(1,128)}', space=vmem, size = 0x12000, scoped, tag = 'internal scratch']
  %s0 = inlined_call_operand.vmem [shape: f32[16,32], index: 0, kind: input, shape index: {}]
  %s1 = inlined_call_operand.vmem [shape: f32[1,32], index: 1, kind: input, shape index: {}]
  %s2 = inlined_call_operand.vmem [shape: f32[1,32], index: 2, kind: input, shape index: {}]
  %s3 = inlined_call_operand.vmem [shape: bf16[32,96], index: 3, kind: input, shape index: {}]
  %s4 = inlined_call_operand.vmem [shape: f32[1,96], index: 4, kind: input, shape index: {}]
  %s5 = inlined_call_operand.vmem [shape: bf16[32,32], index: 5, kind: input, shape index: {}]
  %s6 = inlined_call_operand.vmem [shape: f32[1,32], index: 6, kind: input, shape index: {}]
  %s7 = inlined_call_operand.vmem [shape: f32[1,32], index: 7, kind: input, shape index: {}]
  %s8 = inlined_call_operand.vmem [shape: f32[1,32], index: 8, kind: input, shape index: {}]
  %s9 = inlined_call_operand.vmem [shape: bf16[32,128], index: 9, kind: input, shape index: {}]
  %s10 = inlined_call_operand.vmem [shape: f32[1,128], index: 10, kind: input, shape index: {}]
  %s11 = inlined_call_operand.vmem [shape: bf16[128,32], index: 11, kind: input, shape index: {}]
  %s12 = inlined_call_operand.vmem [shape: f32[1,32], index: 12, kind: input, shape index: {}]
  %s13 = inlined_call_operand.hbm [shape: f32[16,32], index: 13, kind: output, shape index: {0}]
  %s14 = inlined_call_operand.hbm [shape: f32[2,4,8,8], index: 14, kind: output, shape index: {1}]
  %15 = xla_tuple %s13, %s14
  %s16 = sld [smem:[#allocation0]]
  $region93: #{tpu_custom_call.1} parent=0
    _
  %s18 = ssub.s32 1, %s16
  %s19 = scalar_select 0, %s18, %s16
  $region1: #{tpu_custom_call.1} parent=0
    #allocation2 [shape = 'u8[8192]{0}', space=vmem, size = 0x2000, scoped, tag = 'output window, operand 0']
    #allocation3 [shape = 's32[2]{0}', space=sflag, size = 0x8, scoped, tag = 'scoped memory for tpu_custom_call.1']
    #allocation4 [shape = 'u8[32768]{0}', space=vmem, size = 0x8000, scoped, tag = 'output window, operand 1']
    #allocation5 [shape = 's32[2]{0}', space=sflag, size = 0x8, scoped, tag = 'scoped memory for tpu_custom_call.1']
    %20 = vsyncpa [#allocation3], 0
    %s21 = scalar_lea.sflag [#allocation3], 1
    %22 = vsyncpa %s21, 0
    %23 = vsyncpa [#allocation5], 0
    %s24 = scalar_lea.sflag [#allocation5], 1
    %25 = vsyncpa %s24, 0
    loop: start=0, step=1, limit=4
    $region2: #{tpu_custom_call.1} parent=1 // loop_pre_header
      _
    $region3: #{tpu_custom_call.1} parent=1 // loop_header
      %s27 = sphi 0, %s31
      %p28 = scmp.ge.s32.totalorder %s27, 4
      %s37 = sphi 0, %s39
      %s40 = sphi 0, %s37
      %s41 = sphi 0, %s40
      %s57 = sphi 0, %s41
      %s61 = sphi 0, %s61
      %s63 = sphi 0, %s61
      %s64 = sphi 0, %s63
      %s78 = sphi 0, %s64
      %s82 = sphi 0, %s82
      %s84 = sphi 0, %s82
      %s85 = sphi 0, %s84
      %s99 = sphi 0, %s85
      %s103 = sphi 0, %s103
      %s105 = sphi 0, %s103
      %s106 = sphi 0, %s105
      %s120 = sphi 0, %s106
      %s124 = sphi 0, %s124
      %s126 = sphi 0, %s124
      %s127 = sphi 0, %s126
      %s141 = sphi 0, %s127
      %s145 = sphi 0, %s145
      %s147 = sphi 0, %s145
      %s148 = sphi 0, %s147
      %s162 = sphi 0, %s148
      %s166 = sphi 0, %s166
      %s168 = sphi 0, %s166
      %s169 = sphi 0, %s168
      %s183 = sphi 0, %s169
      %s187 = sphi 0, %s187
      %s189 = sphi 0, %s187
      %s190 = sphi 0, %s189
      %s204 = sphi 0, %s190
      %s208 = sphi 0, %s208
      %s210 = sphi 0, %s208
      %s211 = sphi 0, %s210
      %s225 = sphi 0, %s211
      %s229 = sphi 0, %s229
      %s231 = sphi 0, %s229
      %s232 = sphi 0, %s231
      %s246 = sphi 0, %s232
      %s250 = sphi 0, %s250
      %s252 = sphi 0, %s250
      %s253 = sphi 0, %s252
      %s267 = sphi 0, %s253
      %s271 = sphi 0, %s271
      %s273 = sphi 0, %s271
      %s274 = sphi 0, %s273
      %s288 = sphi 0, %s274
      %s292 = sphi 0, %s292
      %s294 = sphi 0, %s292
      %s295 = sphi 0, %s294
      %s309 = sphi 0, %s295
      %s315 = sphi 0, %s317
      %s318 = sphi 0, %s315
      %s319 = sphi 0, %s318
      %s335 = sphi 0, %s319
      %s341 = sphi 0, %s343
      %s344 = sphi 0, %s341
      %s345 = sphi 0, %s344
      %s361 = sphi 0, %s345
    $region4: #{tpu_custom_call.1} parent=1 // loop_header_branch
      %30 = sbr.rel (%p28) target = $region8
    $region5: #{tpu_custom_call.1} parent=1 // loop_body
      %s32 = ssub.s32 %s27, 1
      %s33 = ssub.s32 %s27, 2
      %s34 = sadd.s32 %s27, 1
      %s35 = ssub.s32 %s27, %s34
      %p36 = scmp.eq.s32.totalorder %s35, 0
      %s38 = sadd.s32 %s37, 1
      %s39 = scalar_select %p36, %s37, %s38
      %p42 = pneg %p36
      %p43 = scmp.eq.s32.totalorder %s27, 1
      %p44 = por %p42, %p43
      %p45 = scmp.ne.s32.totalorder %s37, %s40
      %p46 = scmp.eq.s32.totalorder %s27, 0
      %p47 = por %p45, %p46
      %p48 = scmp.ne.s32.totalorder %s37, %s40
      %p49 = scmp.eq.s32.totalorder %s32, 1
      %p50 = por %p48, %p49
      %p51 = scmp.ne.s32.totalorder %s40, %s41
      %p52 = scmp.eq.s32.totalorder %s32, 0
      %p53 = por %p51, %p52
      %p54 = scmp.ne.s32.totalorder %s40, %s41
      %p55 = scmp.eq.s32.totalorder %s33, 1
      %p56 = por %p54, %p55
      %p58 = scmp.ne.s32.totalorder %s41, %s57
      %p59 = scmp.eq.s32.totalorder %s33, 0
      %p60 = por %p58, %p59
      %s62 = sadd.s32 %s61, 1
      %p65 = scmp.eq.s32.totalorder %s27, 1
      %p66 = scmp.ne.s32.totalorder %s61, %s63
      %p67 = scmp.eq.s32.totalorder %s27, 0
      %p68 = por %p66, %p67
      %p69 = scmp.ne.s32.totalorder %s61, %s63
      %p70 = scmp.eq.s32.totalorder %s32, 1
      %p71 = por %p69, %p70
      %p72 = scmp.ne.s32.totalorder %s63, %s64
      %p73 = scmp.eq.s32.totalorder %s32, 0
      %p74 = por %p72, %p73
      %p75 = scmp.ne.s32.totalorder %s63, %s64
      %p76 = scmp.eq.s32.totalorder %s33, 1
      %p77 = por %p75, %p76
      %p79 = scmp.ne.s32.totalorder %s64, %s78
      %p80 = scmp.eq.s32.totalorder %s33, 0
      %p81 = por %p79, %p80
      %s83 = sadd.s32 %s82, 1
      %p86 = scmp.eq.s32.totalorder %s27, 1
      %p87 = scmp.ne.s32.totalorder %s82, %s84
      %p88 = scmp.eq.s32.totalorder %s27, 0
      %p89 = por %p87, %p88
      %p90 = scmp.ne.s32.totalorder %s82, %s84
      %p91 = scmp.eq.s32.totalorder %s32, 1
      %p92 = por %p90, %p91
      %p93 = scmp.ne.s32.totalorder %s84, %s85
      %p94 = scmp.eq.s32.totalorder %s32, 0
      %p95 = por %p93, %p94
      %p96 = scmp.ne.s32.totalorder %s84, %s85
      %p97 = scmp.eq.s32.totalorder %s33, 1
      %p98 = por %p96, %p97
      %p100 = scmp.ne.s32.totalorder %s85, %s99
      %p101 = scmp.eq.s32.totalorder %s33, 0
      %p102 = por %p100, %p101
      %s104 = sadd.s32 %s103, 1
      %p107 = scmp.eq.s32.totalorder %s27, 1
      %p108 = scmp.ne.s32.totalorder %s103, %s105
      %p109 = scmp.eq.s32.totalorder %s27, 0
      %p110 = por %p108, %p109
      %p111 = scmp.ne.s32.totalorder %s103, %s105
      %p112 = scmp.eq.s32.totalorder %s32, 1
      %p113 = por %p111, %p112
      %p114 = scmp.ne.s32.totalorder %s105, %s106
      %p115 = scmp.eq.s32.totalorder %s32, 0
      %p116 = por %p114, %p115
      %p117 = scmp.ne.s32.totalorder %s105, %s106
      %p118 = scmp.eq.s32.totalorder %s33, 1
      %p119 = por %p117, %p118
      %p121 = scmp.ne.s32.totalorder %s106, %s120
      %p122 = scmp.eq.s32.totalorder %s33, 0
      %p123 = por %p121, %p122
      %s125 = sadd.s32 %s124, 1
      %p128 = scmp.eq.s32.totalorder %s27, 1
      %p129 = scmp.ne.s32.totalorder %s124, %s126
      %p130 = scmp.eq.s32.totalorder %s27, 0
      %p131 = por %p129, %p130
      %p132 = scmp.ne.s32.totalorder %s124, %s126
      %p133 = scmp.eq.s32.totalorder %s32, 1
      %p134 = por %p132, %p133
      %p135 = scmp.ne.s32.totalorder %s126, %s127
      %p136 = scmp.eq.s32.totalorder %s32, 0
      %p137 = por %p135, %p136
      %p138 = scmp.ne.s32.totalorder %s126, %s127
      %p139 = scmp.eq.s32.totalorder %s33, 1
      %p140 = por %p138, %p139
      %p142 = scmp.ne.s32.totalorder %s127, %s141
      %p143 = scmp.eq.s32.totalorder %s33, 0
      %p144 = por %p142, %p143
      %s146 = sadd.s32 %s145, 1
      %p149 = scmp.eq.s32.totalorder %s27, 1
      %p150 = scmp.ne.s32.totalorder %s145, %s147
      %p151 = scmp.eq.s32.totalorder %s27, 0
      %p152 = por %p150, %p151
      %p153 = scmp.ne.s32.totalorder %s145, %s147
      %p154 = scmp.eq.s32.totalorder %s32, 1
      %p155 = por %p153, %p154
      %p156 = scmp.ne.s32.totalorder %s147, %s148
      %p157 = scmp.eq.s32.totalorder %s32, 0
      %p158 = por %p156, %p157
      %p159 = scmp.ne.s32.totalorder %s147, %s148
      %p160 = scmp.eq.s32.totalorder %s33, 1
      %p161 = por %p159, %p160
      %p163 = scmp.ne.s32.totalorder %s148, %s162
      %p164 = scmp.eq.s32.totalorder %s33, 0
      %p165 = por %p163, %p164
      %s167 = sadd.s32 %s166, 1
      %p170 = scmp.eq.s32.totalorder %s27, 1
      %p171 = scmp.ne.s32.totalorder %s166, %s168
      %p172 = scmp.eq.s32.totalorder %s27, 0
      %p173 = por %p171, %p172
      %p174 = scmp.ne.s32.totalorder %s166, %s168
      %p175 = scmp.eq.s32.totalorder %s32, 1
      %p176 = por %p174, %p175
      %p177 = scmp.ne.s32.totalorder %s168, %s169
      %p178 = scmp.eq.s32.totalorder %s32, 0
      %p179 = por %p177, %p178
      %p180 = scmp.ne.s32.totalorder %s168, %s169
      %p181 = scmp.eq.s32.totalorder %s33, 1
      %p182 = por %p180, %p181
      %p184 = scmp.ne.s32.totalorder %s169, %s183
      %p185 = scmp.eq.s32.totalorder %s33, 0
      %p186 = por %p184, %p185
      %s188 = sadd.s32 %s187, 1
      %p191 = scmp.eq.s32.totalorder %s27, 1
      %p192 = scmp.ne.s32.totalorder %s187, %s189
      %p193 = scmp.eq.s32.totalorder %s27, 0
      %p194 = por %p192, %p193
      %p195 = scmp.ne.s32.totalorder %s187, %s189
      %p196 = scmp.eq.s32.totalorder %s32, 1
      %p197 = por %p195, %p196
      %p198 = scmp.ne.s32.totalorder %s189, %s190
      %p199 = scmp.eq.s32.totalorder %s32, 0
      %p200 = por %p198, %p199
      %p201 = scmp.ne.s32.totalorder %s189, %s190
      %p202 = scmp.eq.s32.totalorder %s33, 1
      %p203 = por %p201, %p202
      %p205 = scmp.ne.s32.totalorder %s190, %s204
      %p206 = scmp.eq.s32.totalorder %s33, 0
      %p207 = por %p205, %p206
      %s209 = sadd.s32 %s208, 1
      %p212 = scmp.eq.s32.totalorder %s27, 1
      %p213 = scmp.ne.s32.totalorder %s208, %s210
      %p214 = scmp.eq.s32.totalorder %s27, 0
      %p215 = por %p213, %p214
      %p216 = scmp.ne.s32.totalorder %s208, %s210
      %p217 = scmp.eq.s32.totalorder %s32, 1
      %p218 = por %p216, %p217
      %p219 = scmp.ne.s32.totalorder %s210, %s211
      %p220 = scmp.eq.s32.totalorder %s32, 0
      %p221 = por %p219, %p220
      %p222 = scmp.ne.s32.totalorder %s210, %s211
      %p223 = scmp.eq.s32.totalorder %s33, 1
      %p224 = por %p222, %p223
      %p226 = scmp.ne.s32.totalorder %s211, %s225
      %p227 = scmp.eq.s32.totalorder %s33, 0
      %p228 = por %p226, %p227
      %s230 = sadd.s32 %s229, 1
      %p233 = scmp.eq.s32.totalorder %s27, 1
      %p234 = scmp.ne.s32.totalorder %s229, %s231
      %p235 = scmp.eq.s32.totalorder %s27, 0
      %p236 = por %p234, %p235
      %p237 = scmp.ne.s32.totalorder %s229, %s231
      %p238 = scmp.eq.s32.totalorder %s32, 1
      %p239 = por %p237, %p238
      %p240 = scmp.ne.s32.totalorder %s231, %s232
      %p241 = scmp.eq.s32.totalorder %s32, 0
      %p242 = por %p240, %p241
      %p243 = scmp.ne.s32.totalorder %s231, %s232
      %p244 = scmp.eq.s32.totalorder %s33, 1
      %p245 = por %p243, %p244
      %p247 = scmp.ne.s32.totalorder %s232, %s246
      %p248 = scmp.eq.s32.totalorder %s33, 0
      %p249 = por %p247, %p248
      %s251 = sadd.s32 %s250, 1
      %p254 = scmp.eq.s32.totalorder %s27, 1
      %p255 = scmp.ne.s32.totalorder %s250, %s252
      %p256 = scmp.eq.s32.totalorder %s27, 0
      %p257 = por %p255, %p256
      %p258 = scmp.ne.s32.totalorder %s250, %s252
      %p259 = scmp.eq.s32.totalorder %s32, 1
      %p260 = por %p258, %p259
      %p261 = scmp.ne.s32.totalorder %s252, %s253
      %p262 = scmp.eq.s32.totalorder %s32, 0
      %p263 = por %p261, %p262
      %p264 = scmp.ne.s32.totalorder %s252, %s253
      %p265 = scmp.eq.s32.totalorder %s33, 1
      %p266 = por %p264, %p265
      %p268 = scmp.ne.s32.totalorder %s253, %s267
      %p269 = scmp.eq.s32.totalorder %s33, 0
      %p270 = por %p268, %p269
      %s272 = sadd.s32 %s271, 1
      %p275 = scmp.eq.s32.totalorder %s27, 1
      %p276 = scmp.ne.s32.totalorder %s271, %s273
      %p277 = scmp.eq.s32.totalorder %s27, 0
      %p278 = por %p276, %p277
      %p279 = scmp.ne.s32.totalorder %s271, %s273
      %p280 = scmp.eq.s32.totalorder %s32, 1
      %p281 = por %p279, %p280
      %p282 = scmp.ne.s32.totalorder %s273, %s274
      %p283 = scmp.eq.s32.totalorder %s32, 0
      %p284 = por %p282, %p283
      %p285 = scmp.ne.s32.totalorder %s273, %s274
      %p286 = scmp.eq.s32.totalorder %s33, 1
      %p287 = por %p285, %p286
      %p289 = scmp.ne.s32.totalorder %s274, %s288
      %p290 = scmp.eq.s32.totalorder %s33, 0
      %p291 = por %p289, %p290
      %s293 = sadd.s32 %s292, 1
      %p296 = scmp.eq.s32.totalorder %s27, 1
      %p297 = scmp.ne.s32.totalorder %s292, %s294
      %p298 = scmp.eq.s32.totalorder %s27, 0
      %p299 = por %p297, %p298
      %p300 = scmp.ne.s32.totalorder %s292, %s294
      %p301 = scmp.eq.s32.totalorder %s32, 1
      %p302 = por %p300, %p301
      %p303 = scmp.ne.s32.totalorder %s294, %s295
      %p304 = scmp.eq.s32.totalorder %s32, 0
      %p305 = por %p303, %p304
      %p306 = scmp.ne.s32.totalorder %s294, %s295
      %p307 = scmp.eq.s32.totalorder %s33, 1
      %p308 = por %p306, %p307
      %p310 = scmp.ne.s32.totalorder %s295, %s309
      %p311 = scmp.eq.s32.totalorder %s33, 0
      %p312 = por %p310, %p311
      %s313 = ssub.s32 %s27, %s34
      %p314 = scmp.eq.s32.totalorder %s313, 0
      %s316 = sadd.s32 %s315, 1
      %s317 = scalar_select %p314, %s315, %s316
      %p320 = pneg %p314
      %p321 = scmp.eq.s32.totalorder %s27, 1
      %p322 = por %p320, %p321
      %p323 = scmp.ne.s32.totalorder %s315, %s318
      %p324 = scmp.eq.s32.totalorder %s27, 0
      %p325 = por %p323, %p324
      %p326 = scmp.ne.s32.totalorder %s315, %s318
      %p327 = scmp.eq.s32.totalorder %s32, 1
      %p328 = por %p326, %p327
      %p329 = scmp.ne.s32.totalorder %s318, %s319
      %p330 = scmp.eq.s32.totalorder %s32, 0
      %p331 = por %p329, %p330
      %p332 = scmp.ne.s32.totalorder %s318, %s319
      %p333 = scmp.eq.s32.totalorder %s33, 1
      %p334 = por %p332, %p333
      %p336 = scmp.ne.s32.totalorder %s319, %s335
      %p337 = scmp.eq.s32.totalorder %s33, 0
      %p338 = por %p336, %p337
      %s339 = ssub.s32 %s27, %s34
      %p340 = scmp.eq.s32.totalorder %s339, 0
      %s342 = sadd.s32 %s341, 1
      %s343 = scalar_select %p340, %s341, %s342
      %p346 = pneg %p340
      %p347 = scmp.eq.s32.totalorder %s27, 1
      %p348 = por %p346, %p347
      %p349 = scmp.ne.s32.totalorder %s341, %s344
      %p350 = scmp.eq.s32.totalorder %s27, 0
      %p351 = por %p349, %p350
      %p352 = scmp.ne.s32.totalorder %s341, %s344
      %p353 = scmp.eq.s32.totalorder %s32, 1
      %p354 = por %p352, %p353
      %p355 = scmp.ne.s32.totalorder %s344, %s345
      %p356 = scmp.eq.s32.totalorder %s32, 0
      %p357 = por %p355, %p356
      %p358 = scmp.ne.s32.totalorder %s344, %s345
      %p359 = scmp.eq.s32.totalorder %s33, 1
      %p360 = por %p358, %p359
      %p362 = scmp.ne.s32.totalorder %s345, %s361
      %p363 = scmp.eq.s32.totalorder %s33, 0
      %p364 = por %p362, %p363
      %p365 = scmp.le.s32.totalorder 1, %s27
      %p366 = scmp.lt.s32.totalorder %s27, 3
      %p367 = pnand %p365, %p366
      %p368 = pneg %p367
      // Predicated region
      $region9: #{tpu_custom_call.1} parent=5 // pred_check
        _
      $region10: #{tpu_custom_call.1} parent=5 // pred_check_branch
        %370 = sbr.rel (%p367) target = $region12
      $region11: #{tpu_custom_call.1} parent=5 // pred_region
        %s371 = ssub.s32 %s27, 1
        // Predicated region
        $region13: #{tpu_custom_call.1} parent=11 // pred_check
          %p372 = pneg %p74
        $region14: #{tpu_custom_call.1} parent=11 // pred_check_branch
          %374 = sbr.rel (%p372) target = $region16
        $region15: #{tpu_custom_call.1} parent=11 // pred_region
          _
        $region16: #{tpu_custom_call.1} parent=11 // pred_fallthru
          _
        // Predicated region
        $region17: #{tpu_custom_call.1} parent=11 // pred_check
          %p375 = pneg %p95
        $region18: #{tpu_custom_call.1} parent=11 // pred_check_branch
          %377 = sbr.rel (%p375) target = $region20
        $region19: #{tpu_custom_call.1} parent=11 // pred_region
          _
        $region20: #{tpu_custom_call.1} parent=11 // pred_fallthru
          _
        // Predicated region
        $region21: #{tpu_custom_call.1} parent=11 // pred_check
          %p378 = pneg %p116
        $region22: #{tpu_custom_call.1} parent=11 // pred_check_branch
          %380 = sbr.rel (%p378) target = $region24
        $region23: #{tpu_custom_call.1} parent=11 // pred_region
          _
        $region24: #{tpu_custom_call.1} parent=11 // pred_fallthru
          _
        // Predicated region
        $region25: #{tpu_custom_call.1} parent=11 // pred_check
          %p381 = pneg %p137
        $region26: #{tpu_custom_call.1} parent=11 // pred_check_branch
          %383 = sbr.rel (%p381) target = $region28
        $region27: #{tpu_custom_call.1} parent=11 // pred_region
          _
        $region28: #{tpu_custom_call.1} parent=11 // pred_fallthru
          _
        // Predicated region
        $region29: #{tpu_custom_call.1} parent=11 // pred_check
          %p384 = pneg %p158
        $region30: #{tpu_custom_call.1} parent=11 // pred_check_branch
          %386 = sbr.rel (%p384) target = $region32
        $region31: #{tpu_custom_call.1} parent=11 // pred_region
          _
        $region32: #{tpu_custom_call.1} parent=11 // pred_fallthru
          _
        // Predicated region
        $region33: #{tpu_custom_call.1} parent=11 // pred_check
          %p387 = pneg %p179
        $region34: #{tpu_custom_call.1} parent=11 // pred_check_branch
          %389 = sbr.rel (%p387) target = $region36
        $region35: #{tpu_custom_call.1} parent=11 // pred_region
          _
        $region36: #{tpu_custom_call.1} parent=11 // pred_fallthru
          _
        // Predicated region
        $region37: #{tpu_custom_call.1} parent=11 // pred_check
          %p390 = pneg %p200
        $region38: #{tpu_custom_call.1} parent=11 // pred_check_branch
          %392 = sbr.rel (%p390) target = $region40
        $region39: #{tpu_custom_call.1} parent=11 // pred_region
          _
        $region40: #{tpu_custom_call.1} parent=11 // pred_fallthru
          _
        // Predicated region
        $region41: #{tpu_custom_call.1} parent=11 // pred_check
          %p393 = pneg %p221
        $region42: #{tpu_custom_call.1} parent=11 // pred_check_branch
          %395 = sbr.rel (%p393) target = $region44
        $region43: #{tpu_custom_call.1} parent=11 // pred_region
          _
        $region44: #{tpu_custom_call.1} parent=11 // pred_fallthru
          _
        // Predicated region
        $region45: #{tpu_custom_call.1} parent=11 // pred_check
          %p396 = pneg %p242
        $region46: #{tpu_custom_call.1} parent=11 // pred_check_branch
          %398 = sbr.rel (%p396) target = $region48
        $region47: #{tpu_custom_call.1} parent=11 // pred_region
          _
        $region48: #{tpu_custom_call.1} parent=11 // pred_fallthru
          _
        // Predicated region
        $region49: #{tpu_custom_call.1} parent=11 // pred_check
          %p399 = pneg %p263
        $region50: #{tpu_custom_call.1} parent=11 // pred_check_branch
          %401 = sbr.rel (%p399) target = $region52
        $region51: #{tpu_custom_call.1} parent=11 // pred_region
          _
        $region52: #{tpu_custom_call.1} parent=11 // pred_fallthru
          _
        // Predicated region
        $region53: #{tpu_custom_call.1} parent=11 // pred_check
          %p402 = pneg %p284
        $region54: #{tpu_custom_call.1} parent=11 // pred_check_branch
          %404 = sbr.rel (%p402) target = $region56
        $region55: #{tpu_custom_call.1} parent=11 // pred_region
          _
        $region56: #{tpu_custom_call.1} parent=11 // pred_fallthru
          _
        // Predicated region
        $region57: #{tpu_custom_call.1} parent=11 // pred_check
          %p405 = pneg %p305
        $region58: #{tpu_custom_call.1} parent=11 // pred_check_branch
          %407 = sbr.rel (%p405) target = $region60
        $region59: #{tpu_custom_call.1} parent=11 // pred_region
          _
        $region60: #{tpu_custom_call.1} parent=11 // pred_fallthru
          _
      $region12: #{tpu_custom_call.1} parent=5 // pred_fallthru
        _
      %p408 = scmp.lt.s32.totalorder %s27, 2
      // Predicated region
      $region61: #{tpu_custom_call.1} parent=5 // pred_check
        %p409 = pneg %p408
      $region62: #{tpu_custom_call.1} parent=5 // pred_check_branch
        %411 = sbr.rel (%p409) target = $region64
      $region63: #{tpu_custom_call.1} parent=5 // pred_region
        // Predicated region
        $region65: #{tpu_custom_call.1} parent=63 // pred_check
          %p412 = pneg %p47
        $region66: #{tpu_custom_call.1} parent=63 // pred_check_branch
          %414 = sbr.rel (%p412) target = $region68
        $region67: #{tpu_custom_call.1} parent=63 // pred_region
          %p415 = scmp.lt.s32.totalorder %s27, 1
          %s416 = scalar_select %p415, %s27, 1
          %s417 = smul.addr %s416, 8
          %s418 = scalar_lea.vmem %s0, %s417
        $region68: #{tpu_custom_call.1} parent=63 // pred_fallthru
          _
      $region64: #{tpu_custom_call.1} parent=5 // pred_fallthru
        _
      %p419 = scmp.le.s32.totalorder 1, %s27
      %p420 = scmp.lt.s32.totalorder %s27, 3
      %p421 = pnand %p419, %p420
      %p422 = pneg %p421
      // Predicated region
      $region69: #{tpu_custom_call.1} parent=5 // pred_check
        _
      $region70: #{tpu_custom_call.1} parent=5 // pred_check_branch
        %424 = sbr.rel (%p421) target = $region72
      $region71: #{tpu_custom_call.1} parent=5 // pred_region
        %s425 = ssub.s32 %s27, 1
        %p426 = scmp.lt.s32.totalorder %s32, 1
        %s427 = scalar_select %p426, %s32, 1
        %s428 = smul.addr %s427, 8
        %s429 = scalar_lea.vmem %s0, %s428
        %p430 = pneg %p53
        %p431 = pneg %p50
        %p432 = pneg %p74
        %p433 = pneg %p71
        %p434 = pneg %p95
        %p435 = pneg %p92
        %p436 = pneg %p116
        %p437 = pneg %p113
        %p438 = pneg %p137
        %p439 = pneg %p134
        %p440 = pneg %p158
        %p441 = pneg %p155
        %p442 = pneg %p179
        %p443 = pneg %p176
        %p444 = pneg %p200
        %p445 = pneg %p197
        %p446 = pneg %p221
        %p447 = pneg %p218
        %p448 = pneg %p242
        %p449 = pneg %p239
        %p450 = pneg %p263
        %p451 = pneg %p260
        %p452 = pneg %p284
        %p453 = pneg %p281
        %p454 = pneg %p305
        %p455 = pneg %p302
        %p456 = pneg %p331
        %p457 = pneg %p328
        %s458 = sand.u32 %s318, 1
        %s459 = scalar_lea.sflag [#allocation3], %s458
        %s460 = sand.u32 %s318, 1
        %s461 = smul.addr %s460, 8
        %s462 = scalar_lea.vmem [#allocation2], %s461
        %p463 = pneg %p357
        %p464 = pneg %p354
        %s465 = sand.u32 %s344, 1
        %s466 = scalar_lea.sflag [#allocation5], %s465
        %s467 = sand.u32 %s344, 1
        %s468 = smul.addr %s467, 32
        %s469 = scalar_lea.vmem [#allocation4], %s468
        %p470 = scmp.lt.s32.totalorder %s32, 1
        %s471 = scalar_select %p470, %s32, 1
        %s472 = smul.addr %s471, 8
        %s473 = scalar_lea.vmem %s0, %s472
        %v475 = vld [vmem:[%s473] sm:$0xff]
        %v476 = vld [vmem:[%s1] sm:$0x1]
        %v477 = vld [vmem:[%s2] sm:$0x1]
        %vm478 = vcmask 261120
        %v479 = vsel %vm478, %v475, 0.0
        %480 = vadd.xlane.f32.xlu0 %v479
        %v481 = vpop.xlane.xlu0 %480
        %v482 = vrcp.pop 32.0
        %v483 = vmul.f32 %v481, %v482
        %v484 = vsub.f32 %v475, %v483
        %v485 = vmul.f32 %v484, %v484
        %v486 = vsel %vm478, %v485, 0.0
        %487 = vadd.xlane.f32.xlu0 %v486
        %v488 = vpop.xlane.xlu0 %487
        %v489 = vmul.f32 %v488, %v482
        %v490 = vadd.f32 %v489, 1e-05
        %v491 = vrsqrt.pop %v490
        %v492 = vmul.f32 %v484, %v491
        %v494 = vlaneseq
        %v495 = vshrl.u32 %v494, 7
        %v496 = vsub.s32 0, %v495
        %v497 = vrot.slane %v476, %v496
        %v499 = vmul.f32 %v492, %v497
        %v501 = vlaneseq
        %v502 = vshrl.u32 %v501, 7
        %v503 = vsub.s32 0, %v502
        %v504 = vrot.slane %v477, %v503
        %v506 = vadd.f32 %v499, %v504
        %v507 = vpack.c.bf16 %v506, %v506
        %v508 = vld [vmem:[%s3] sm:$0xf]
        %v509 = vld [vmem:[%s3 + $0x4] sm:$0xf]
        %v510 = vld [vmem:[%s3 + $0x8] sm:$0xf]
        %v511 = vld [vmem:[%s3 + $0xc] sm:$0xf]
        %v512 = vld [vmem:[%s4] sm:$0x1]
        %v514 = vlaneseq
        %v515 = vshrl.u32 %v514, 7
        %v516 = vsub.s32 0, %v515
        %v517 = vrot.slane %v512, %v516
        %v523 = vunpack.c.l.b16 %v508
        %v524 = vunpack.c.l.b16 %v509
        %v525 = vunpack.c.l.b16 %v510
        %v526 = vunpack.c.l.b16 %v511
        %v527 = vpack.c.b16 %v524, %v523
        %v528 = vpack.c.b16 %v526, %v525
        %v532 = vsel %vm478, %v507, 0
        %534 = vmatprep.subr.bf16.mxu0 0
        %535 = vmatpush1.bf16.msra.mxu0 %v527
        %536 = vmatprep.subr.bf16.mxu0 0
        %537 = vmatpush1.bf16.msra.mxu0 %v528
        %538 = vmatprep.subr.bf16.mxu0 0
        %539 = vmatpush1.bf16.msra.mxu0 0
        %540 = vmatprep.subr.bf16.mxu0 0
        %541 = vmatpush1.bf16.msra.mxu0 0
        %542 = vmatprep.subr.bf16.mxu0 0
        %543 = vmatpush1.bf16.msra.mxu0 0
        %544 = vmatprep.subr.bf16.mxu0 0
        %545 = vmatpush1.bf16.msra.mxu0 0
        %546 = vmatprep.subr.bf16.mxu0 0
        %547 = vmatpush1.bf16.msra.mxu0 0
        %548 = vmatprep.subr.bf16.mxu0 0
        %549 = vmatpush1.bf16.msra.mxu0 0
        %550 = vmatprep.subr.bf16.mxu0 0
        %551 = vmatpush1.bf16.msra.mxu0 0
        %552 = vmatprep.subr.bf16.mxu0 0
        %553 = vmatpush1.bf16.msra.mxu0 0
        %554 = vmatprep.subr.bf16.mxu0 0
        %555 = vmatpush1.bf16.msra.mxu0 0
        %556 = vmatprep.subr.bf16.mxu0 0
        %557 = vmatpush1.bf16.msra.mxu0 0
        %558 = vmatprep.subr.bf16.mxu0 0
        %559 = vmatpush1.bf16.msra.mxu0 0
        %560 = vmatprep.subr.bf16.mxu0 0
        %561 = vmatpush1.bf16.msra.mxu0 0
        %562 = vmatprep.subr.bf16.mxu0 0
        %563 = vmatpush1.bf16.msra.mxu0 0
        %564 = vmatprep.subr.bf16.mxu0 0
        %565 = vmatpush1.bf16.msra.mxu0 0
        %566 = vmatprep.mubr.bf16.mxu0 0
        %567 = vmatmul.mubr.bf16.gmra.mrb[0].mxu0 %v532
        %v568 = vpop.f32.mrb[0].mxu0
        %v569 = vadd.f32 %v517, %v568
        %v570 = vpop.f32.mrb[0].mxu0
        %v571 = vpop.f32.mrb[0].mxu0
        %v572 = vpop.f32.mrb[0].mxu0
        %573 = vdwg.mxu0
        %v574 = vlaneseq
        %v575 = vshrl.u32 %v574, 7
        %v576 = vlaneseq
        %v577 = vand.u32 %v576, 127
        %vm578 = vcmp.le.s32.totalorder %v577, %v575
        %v579 = vsel %vm578, 0.0, -inf
        %v580 = vpack.c.bf16 %v569, %v569
        %582 = vrot.lane.b32.xlu0 %v580, 96
        %v583 = vpop.permute.xlu0 %582
        %vm584 = vcmask 64512
        %v586 = vsel %vm584, %v580, 0
        %v589 = vsel %vm584, %v583, 0
        %591 = vmatprep.subr.bf16.mxu0 0
        %592 = vmatpush1.bf16.xpose.msra.mxu0 %v589
        %593 = vmatprep.subr.bf16.mxu0 0
        %594 = vmatpush1.bf16.xpose.msra.mxu0 0
        %595 = vmatprep.subr.bf16.mxu0 0
        %596 = vmatpush1.bf16.xpose.msra.mxu0 0
        %597 = vmatprep.subr.bf16.mxu0 0
        %598 = vmatpush1.bf16.xpose.msra.mxu0 0
        %599 = vmatprep.subr.bf16.mxu0 0
        %600 = vmatpush1.bf16.xpose.msra.mxu0 0
        %601 = vmatprep.subr.bf16.mxu0 0
        %602 = vmatpush1.bf16.xpose.msra.mxu0 0
        %603 = vmatprep.subr.bf16.mxu0 0
        %604 = vmatpush1.bf16.xpose.msra.mxu0 0
        %605 = vmatprep.subr.bf16.mxu0 0
        %606 = vmatpush1.bf16.xpose.msra.mxu0 0
        %607 = vmatprep.subr.bf16.mxu0 0
        %608 = vmatpush1.bf16.xpose.msra.mxu0 0
        %609 = vmatprep.subr.bf16.mxu0 0
        %610 = vmatpush1.bf16.xpose.msra.mxu0 0
        %611 = vmatprep.subr.bf16.mxu0 0
        %612 = vmatpush1.bf16.xpose.msra.mxu0 0
        %613 = vmatprep.subr.bf16.mxu0 0
        %614 = vmatpush1.bf16.xpose.msra.mxu0 0
        %615 = vmatprep.subr.bf16.mxu0 0
        %616 = vmatpush1.bf16.xpose.msra.mxu0 0
        %617 = vmatprep.subr.bf16.mxu0 0
        %618 = vmatpush1.bf16.xpose.msra.mxu0 0
        %619 = vmatprep.subr.bf16.mxu0 0
        %620 = vmatpush1.bf16.xpose.msra.mxu0 0
        %621 = vmatprep.subr.bf16.mxu0 0
        %622 = vmatpush1.bf16.xpose.msra.mxu0 0
        %623 = vmatprep.mubr.bf16.mxu0 0
        %624 = vmatmul.mubr.bf16.gmra.mrb[0].mxu0 %v586
        %v625 = vpop.f32.mrb[0].mxu0
        %v626 = vadd.f32 %v579, %v625
        %v627 = vpop.f32.mrb[0].mxu0
        %v628 = vpop.f32.mrb[0].mxu0
        %v629 = vpop.f32.mrb[0].mxu0
        %630 = vdwg.mxu0
        %v631 = vsel %vm584, %v626, -inf
        %632 = vmax.xlane.f32.xlu0 %v631
        %v633 = vpop.xlane.xlu0 %632
        %v634 = vsub.f32 %v626, %v633
        %v635 = vmul.f32 %v634, 1.442695
        %v636 = vpow.pop %v635
        %v637 = vsel %vm584, %v636, 0.0
        %638 = vadd.xlane.f32.xlu0 %v637
        %v639 = vpop.xlane.xlu0 %638
        %v640 = vrcp.pop %v639
        %v641 = vmul.f32 %v636, %v640
        %642 = vst.msk [vmem:[%s469] sm:$0xff] %vm584, %v641
        %v643 = vpack.c.bf16 %v641, %v641
        %644 = vrot.lane.b32.xlu0 %v580, 64
        %v645 = vpop.permute.xlu0 %644
        %v647 = vsel %vm584, %v643, 0
        %vm649 = vcmask 1043456
        %v651 = vsel %vm649, %v645, 0
        %653 = vmatprep.subr.bf16.mxu0 0
        %654 = vmatpush1.bf16.msra.mxu0 %v651
        %655 = vmatprep.subr.bf16.mxu0 0
        %656 = vmatpush1.bf16.msra.mxu0 0
        %657 = vmatprep.subr.bf16.mxu0 0
        %658 = vmatpush1.bf16.msra.mxu0 0
        %659 = vmatprep.subr.bf16.mxu0 0
        %660 = vmatpush1.bf16.msra.mxu0 0
        %661 = vmatprep.subr.bf16.mxu0 0
        %662 = vmatpush1.bf16.msra.mxu0 0
        %663 = vmatprep.subr.bf16.mxu0 0
        %664 = vmatpush1.bf16.msra.mxu0 0
        %665 = vmatprep.subr.bf16.mxu0 0
        %666 = vmatpush1.bf16.msra.mxu0 0
        %667 = vmatprep.subr.bf16.mxu0 0
        %668 = vmatpush1.bf16.msra.mxu0 0
        %669 = vmatprep.subr.bf16.mxu0 0
        %670 = vmatpush1.bf16.msra.mxu0 0
        %671 = vmatprep.subr.bf16.mxu0 0
        %672 = vmatpush1.bf16.msra.mxu0 0
        %673 = vmatprep.subr.bf16.mxu0 0
        %674 = vmatpush1.bf16.msra.mxu0 0
        %675 = vmatprep.subr.bf16.mxu0 0
        %676 = vmatpush1.bf16.msra.mxu0 0
        %677 = vmatprep.subr.bf16.mxu0 0
        %678 = vmatpush1.bf16.msra.mxu0 0
        %679 = vmatprep.subr.bf16.mxu0 0
        %680 = vmatpush1.bf16.msra.mxu0 0
        %681 = vmatprep.subr.bf16.mxu0 0
        %682 = vmatpush1.bf16.msra.mxu0 0
        %683 = vmatprep.subr.bf16.mxu0 0
        %684 = vmatpush1.bf16.msra.mxu0 0
        %685 = vmatprep.mubr.bf16.mxu0 0
        %686 = vmatmul.mubr.bf16.gmra.mrb[0].mxu0 %v647
        %v687 = vpop.f32.mrb[0].mxu0
        %v688 = vadd.f32 0.0, %v687
        %v689 = vpop.f32.mrb[0].mxu0
        %v690 = vpop.f32.mrb[0].mxu0
        %v691 = vpop.f32.mrb[0].mxu0
        %692 = vdwg.mxu0
        %693 = vrot.lane.b32.xlu0 %v580, 120
        %v694 = vpop.permute.xlu0 %693
        %695 = vrot.lane.b32.xlu0 %v580, 88
        %v696 = vpop.permute.xlu0 %695
        %v698 = vsel %vm584, %v694, 0
        %v701 = vsel %vm584, %v696, 0
        %703 = vmatprep.subr.bf16.mxu0 0
        %704 = vmatpush1.bf16.xpose.msra.mxu0 %v701
        %705 = vmatprep.subr.bf16.mxu0 0
        %706 = vmatpush1.bf16.xpose.msra.mxu0 0
        %707 = vmatprep.subr.bf16.mxu0 0
        %708 = vmatpush1.bf16.xpose.msra.mxu0 0
        %709 = vmatprep.subr.bf16.mxu0 0
        %710 = vmatpush1.bf16.xpose.msra.mxu0 0
        %711 = vmatprep.subr.bf16.mxu0 0
        %712 = vmatpush1.bf16.xpose.msra.mxu0 0
        %713 = vmatprep.subr.bf16.mxu0 0
        %714 = vmatpush1.bf16.xpose.msra.mxu0 0
        %715 = vmatprep.subr.bf16.mxu0 0
        %716 = vmatpush1.bf16.xpose.msra.mxu0 0
        %717 = vmatprep.subr.bf16.mxu0 0
        %718 = vmatpush1.bf16.xpose.msra.mxu0 0
        %719 = vmatprep.subr.bf16.mxu0 0
        %720 = vmatpush1.bf16.xpose.msra.mxu0 0
        %721 = vmatprep.subr.bf16.mxu0 0
        %722 = vmatpush1.bf16.xpose.msra.mxu0 0
        %723 = vmatprep.subr.bf16.mxu0 0
        %724 = vmatpush1.bf16.xpose.msra.mxu0 0
        %725 = vmatprep.subr.bf16.mxu0 0
        %726 = vmatpush1.bf16.xpose.msra.mxu0 0
        %727 = vmatprep.subr.bf16.mxu0 0
        %728 = vmatpush1.bf16.xpose.msra.mxu0 0
        %729 = vmatprep.subr.bf16.mxu0 0
        %730 = vmatpush1.bf16.xpose.msra.mxu0 0
        %731 = vmatprep.subr.bf16.mxu0 0
        %732 = vmatpush1.bf16.xpose.msra.mxu0 0
        %733 = vmatprep.subr.bf16.mxu0 0
        %734 = vmatpush1.bf16.xpose.msra.mxu0 0
        %735 = vmatprep.mubr.bf16.mxu0 0
        %736 = vmatmul.mubr.bf16.gmra.mrb[0].mxu0 %v698
        %v737 = vpop.f32.mrb[0].mxu0
        %v738 = vadd.f32 %v579, %v737
        %v739 = vpop.f32.mrb[0].mxu0
        %v740 = vpop.f32.mrb[0].mxu0
        %v741 = vpop.f32.mrb[0].mxu0
        %742 = vdwg.mxu0
        %v743 = vsel %vm584, %v738, -inf
        %744 = vmax.xlane.f32.xlu0 %v743
        %v745 = vpop.xlane.xlu0 %744
        %v746 = vsub.f32 %v738, %v745
        %v747 = vmul.f32 %v746, 1.442695
        %v748 = vpow.pop %v747
        %v749 = vsel %vm584, %v748, 0.0
        %750 = vadd.xlane.f32.xlu0 %v749
        %v751 = vpop.xlane.xlu0 %750
        %v752 = vrcp.pop %v751
        %v753 = vmul.f32 %v748, %v752
        %s754 = scalar_lea.vmem %s469, 8 [#allocation4]
        %755 = vst.msk [vmem:[%s754] sm:$0xff] %vm584, %v753
        %v756 = vpack.c.bf16 %v753, %v753
        %757 = vrot.lane.b32.xlu0 %v580, 56
        %v758 = vpop.permute.xlu0 %757
        %v760 = vsel %vm584, %v756, 0
        %v763 = vsel %vm649, %v758, 0
        %765 = vmatprep.subr.bf16.mxu0 0
        %766 = vmatpush1.bf16.msra.mxu0 %v763
        %767 = vmatprep.subr.bf16.mxu0 0
        %768 = vmatpush1.bf16.msra.mxu0 0
        %769 = vmatprep.subr.bf16.mxu0 0
        %770 = vmatpush1.bf16.msra.mxu0 0
        %771 = vmatprep.subr.bf16.mxu0 0
        %772 = vmatpush1.bf16.msra.mxu0 0
        %773 = vmatprep.subr.bf16.mxu0 0
        %774 = vmatpush1.bf16.msra.mxu0 0
        %775 = vmatprep.subr.bf16.mxu0 0
        %776 = vmatpush1.bf16.msra.mxu0 0
        %777 = vmatprep.subr.bf16.mxu0 0
        %778 = vmatpush1.bf16.msra.mxu0 0
        %779 = vmatprep.subr.bf16.mxu0 0
        %780 = vmatpush1.bf16.msra.mxu0 0
        %781 = vmatprep.subr.bf16.mxu0 0
        %782 = vmatpush1.bf16.msra.mxu0 0
        %783 = vmatprep.subr.bf16.mxu0 0
        %784 = vmatpush1.bf16.msra.mxu0 0
        %785 = vmatprep.subr.bf16.mxu0 0
        %786 = vmatpush1.bf16.msra.mxu0 0
        %787 = vmatprep.subr.bf16.mxu0 0
        %788 = vmatpush1.bf16.msra.mxu0 0
        %789 = vmatprep.subr.bf16.mxu0 0
        %790 = vmatpush1.bf16.msra.mxu0 0
        %791 = vmatprep.subr.bf16.mxu0 0
        %792 = vmatpush1.bf16.msra.mxu0 0
        %793 = vmatprep.subr.bf16.mxu0 0
        %794 = vmatpush1.bf16.msra.mxu0 0
        %795 = vmatprep.subr.bf16.mxu0 0
        %796 = vmatpush1.bf16.msra.mxu0 0
        %797 = vmatprep.mubr.bf16.mxu0 0
        %798 = vmatmul.mubr.bf16.gmra.mrb[0].mxu0 %v760
        %v799 = vpop.f32.mrb[0].mxu0
        %v800 = vadd.f32 0.0, %v799
        %v801 = vpop.f32.mrb[0].mxu0
        %v802 = vpop.f32.mrb[0].mxu0
        %v803 = vpop.f32.mrb[0].mxu0
        %804 = vdwg.mxu0
        %805 = vrot.lane.b32.xlu0 %v580, 112
        %v806 = vpop.permute.xlu0 %805
        %807 = vrot.lane.b32.xlu0 %v580, 80
        %v808 = vpop.permute.xlu0 %807
        %v810 = vsel %vm584, %v806, 0
        %v813 = vsel %vm584, %v808, 0
        %815 = vmatprep.subr.bf16.mxu0 0
        %816 = vmatpush1.bf16.xpose.msra.mxu0 %v813
        %817 = vmatprep.subr.bf16.mxu0 0
        %818 = vmatpush1.bf16.xpose.msra.mxu0 0
        %819 = vmatprep.subr.bf16.mxu0 0
        %820 = vmatpush1.bf16.xpose.msra.mxu0 0
        %821 = vmatprep.subr.bf16.mxu0 0
        %822 = vmatpush1.bf16.xpose.msra.mxu0 0
        %823 = vmatprep.subr.bf16.mxu0 0
        %824 = vmatpush1.bf16.xpose.msra.mxu0 0
        %825 = vmatprep.subr.bf16.mxu0 0
        %826 = vmatpush1.bf16.xpose.msra.mxu0 0
        %827 = vmatprep.subr.bf16.mxu0 0
        %828 = vmatpush1.bf16.xpose.msra.mxu0 0
        %829 = vmatprep.subr.bf16.mxu0 0
        %830 = vmatpush1.bf16.xpose.msra.mxu0 0
        %831 = vmatprep.subr.bf16.mxu0 0
        %832 = vmatpush1.bf16.xpose.msra.mxu0 0
        %833 = vmatprep.subr.bf16.mxu0 0
        %834 = vmatpush1.bf16.xpose.msra.mxu0 0
        %835 = vmatprep.subr.bf16.mxu0 0
        %836 = vmatpush1.bf16.xpose.msra.mxu0 0
        %837 = vmatprep.subr.bf16.mxu0 0
        %838 = vmatpush1.bf16.xpose.msra.mxu0 0
        %839 = vmatprep.subr.bf16.mxu0 0
        %840 = vmatpush1.bf16.xpose.msra.mxu0 0
        %841 = vmatprep.subr.bf16.mxu0 0
        %842 = vmatpush1.bf16.xpose.msra.mxu0 0
        %843 = vmatprep.subr.bf16.mxu0 0
        %844 = vmatpush1.bf16.xpose.msra.mxu0 0
        %845 = vmatprep.subr.bf16.mxu0 0
        %846 = vmatpush1.bf16.xpose.msra.mxu0 0
        %847 = vmatprep.mubr.bf16.mxu0 0
        %848 = vmatmul.mubr.bf16.gmra.mrb[0].mxu0 %v810
        %v849 = vpop.f32.mrb[0].mxu0
        %v850 = vadd.f32 %v579, %v849
        %v851 = vpop.f32.mrb[0].mxu0
        %v852 = vpop.f32.mrb[0].mxu0
        %v853 = vpop.f32.mrb[0].mxu0
        %854 = vdwg.mxu0
        %v855 = vsel %vm584, %v850, -inf
        %856 = vmax.xlane.f32.xlu0 %v855
        %v857 = vpop.xlane.xlu0 %856
        %v858 = vsub.f32 %v850, %v857
        %v859 = vmul.f32 %v858, 1.442695
        %v860 = vpow.pop %v859
        %v861 = vsel %vm584, %v860, 0.0
        %862 = vadd.xlane.f32.xlu0 %v861
        %v863 = vpop.xlane.xlu0 %862
        %v864 = vrcp.pop %v863
        %v865 = vmul.f32 %v860, %v864
        %s866 = scalar_lea.vmem %s469, 16 [#allocation4]
        %867 = vst.msk [vmem:[%s866] sm:$0xff] %vm584, %v865
        %v868 = vpack.c.bf16 %v865, %v865
        %869 = vrot.lane.b32.xlu0 %v580, 48
        %v870 = vpop.permute.xlu0 %869
        %v872 = vsel %vm584, %v868, 0
        %v875 = vsel %vm649, %v870, 0
        %877 = vmatprep.subr.bf16.mxu0 0
        %878 = vmatpush1.bf16.msra.mxu0 %v875
        %879 = vmatprep.subr.bf16.mxu0 0
        %880 = vmatpush1.bf16.msra.mxu0 0
        %881 = vmatprep.subr.bf16.mxu0 0
        %882 = vmatpush1.bf16.msra.mxu0 0
        %883 = vmatprep.subr.bf16.mxu0 0
        %884 = vmatpush1.bf16.msra.mxu0 0
        %885 = vmatprep.subr.bf16.mxu0 0
        %886 = vmatpush1.bf16.msra.mxu0 0
        %887 = vmatprep.subr.bf16.mxu0 0
        %888 = vmatpush1.bf16.msra.mxu0 0
        %889 = vmatprep.subr.bf16.mxu0 0
        %890 = vmatpush1.bf16.msra.mxu0 0
        %891 = vmatprep.subr.bf16.mxu0 0
        %892 = vmatpush1.bf16.msra.mxu0 0
        %893 = vmatprep.subr.bf16.mxu0 0
        %894 = vmatpush1.bf16.msra.mxu0 0
        %895 = vmatprep.subr.bf16.mxu0 0
        %896 = vmatpush1.bf16.msra.mxu0 0
        %897 = vmatprep.subr.bf16.mxu0 0
        %898 = vmatpush1.bf16.msra.mxu0 0
        %899 = vmatprep.subr.bf16.mxu0 0
        %900 = vmatpush1.bf16.msra.mxu0 0
        %901 = vmatprep.subr.bf16.mxu0 0
        %902 = vmatpush1.bf16.msra.mxu0 0
        %903 = vmatprep.subr.bf16.mxu0 0
        %904 = vmatpush1.bf16.msra.mxu0 0
        %905 = vmatprep.subr.bf16.mxu0 0
        %906 = vmatpush1.bf16.msra.mxu0 0
        %907 = vmatprep.subr.bf16.mxu0 0
        %908 = vmatpush1.bf16.msra.mxu0 0
        %909 = vmatprep.mubr.bf16.mxu0 0
        %910 = vmatmul.mubr.bf16.gmra.mrb[0].mxu0 %v872
        %v911 = vpop.f32.mrb[0].mxu0
        %v912 = vadd.f32 0.0, %v911
        %v913 = vpop.f32.mrb[0].mxu0
        %v914 = vpop.f32.mrb[0].mxu0
        %v915 = vpop.f32.mrb[0].mxu0
        %916 = vdwg.mxu0
        %917 = vrot.lane.b32.xlu0 %v580, 104
        %v918 = vpop.permute.xlu0 %917
        %919 = vrot.lane.b32.xlu0 %v580, 72
        %v920 = vpop.permute.xlu0 %919
        %v922 = vsel %vm584, %v918, 0
        %v925 = vsel %vm584, %v920, 0
        %927 = vmatprep.subr.bf16.mxu0 0
        %928 = vmatpush1.bf16.xpose.msra.mxu0 %v925
        %929 = vmatprep.subr.bf16.mxu0 0
        %930 = vmatpush1.bf16.xpose.msra.mxu0 0
        %931 = vmatprep.subr.bf16.mxu0 0
        %932 = vmatpush1.bf16.xpose.msra.mxu0 0
        %933 = vmatprep.subr.bf16.mxu0 0
        %934 = vmatpush1.bf16.xpose.msra.mxu0 0
        %935 = vmatprep.subr.bf16.mxu0 0
        %936 = vmatpush1.bf16.xpose.msra.mxu0 0
        %937 = vmatprep.subr.bf16.mxu0 0
        %938 = vmatpush1.bf16.xpose.msra.mxu0 0
        %939 = vmatprep.subr.bf16.mxu0 0
        %940 = vmatpush1.bf16.xpose.msra.mxu0 0
        %941 = vmatprep.subr.bf16.mxu0 0
        %942 = vmatpush1.bf16.xpose.msra.mxu0 0
        %943 = vmatprep.subr.bf16.mxu0 0
        %944 = vmatpush1.bf16.xpose.msra.mxu0 0
        %945 = vmatprep.subr.bf16.mxu0 0
        %946 = vmatpush1.bf16.xpose.msra.mxu0 0
        %947 = vmatprep.subr.bf16.mxu0 0
        %948 = vmatpush1.bf16.xpose.msra.mxu0 0
        %949 = vmatprep.subr.bf16.mxu0 0
        %950 = vmatpush1.bf16.xpose.msra.mxu0 0
        %951 = vmatprep.subr.bf16.mxu0 0
        %952 = vmatpush1.bf16.xpose.msra.mxu0 0
        %953 = vmatprep.subr.bf16.mxu0 0
        %954 = vmatpush1.bf16.xpose.msra.mxu0 0
        %955 = vmatprep.subr.bf16.mxu0 0
        %956 = vmatpush1.bf16.xpose.msra.mxu0 0
        %957 = vmatprep.subr.bf16.mxu0 0
        %958 = vmatpush1.bf16.xpose.msra.mxu0 0
        %959 = vmatprep.mubr.bf16.mxu0 0
        %960 = vmatmul.mubr.bf16.gmra.mrb[0].mxu0 %v922
        %v961 = vpop.f32.mrb[0].mxu0
        %v962 = vadd.f32 %v579, %v961
        %v963 = vpop.f32.mrb[0].mxu0
        %v964 = vpop.f32.mrb[0].mxu0
        %v965 = vpop.f32.mrb[0].mxu0
        %966 = vdwg.mxu0
        %v967 = vsel %vm584, %v962, -inf
        %968 = vmax.xlane.f32.xlu0 %v967
        %v969 = vpop.xlane.xlu0 %968
        %v970 = vsub.f32 %v962, %v969
        %v971 = vmul.f32 %v970, 1.442695
        %v972 = vpow.pop %v971
        %v973 = vsel %vm584, %v972, 0.0
        %974 = vadd.xlane.f32.xlu0 %v973
        %v975 = vpop.xlane.xlu0 %974
        %v976 = vrcp.pop %v975
        %v977 = vmul.f32 %v972, %v976
        %s978 = scalar_lea.vmem %s469, 24 [#allocation4]
        %979 = vst.msk [vmem:[%s978] sm:$0xff] %vm584, %v977
        %v980 = vpack.c.bf16 %v977, %v977
        %981 = vrot.lane.b32.xlu0 %v580, 40
        %v982 = vpop.permute.xlu0 %981
        %v984 = vsel %vm584, %v980, 0
        %v987 = vsel %vm649, %v982, 0
        %989 = vmatprep.subr.bf16.mxu0 0
        %990 = vmatpush1.bf16.msra.mxu0 %v987
        %991 = vmatprep.subr.bf16.mxu0 0
        %992 = vmatpush1.bf16.msra.mxu0 0
        %993 = vmatprep.subr.bf16.mxu0 0
        %994 = vmatpush1.bf16.msra.mxu0 0
        %995 = vmatprep.subr.bf16.mxu0 0
        %996 = vmatpush1.bf16.msra.mxu0 0
        %997 = vmatprep.subr.bf16.mxu0 0
        %998 = vmatpush1.bf16.msra.mxu0 0
        %999 = vmatprep.subr.bf16.mxu0 0
        %1000 = vmatpush1.bf16.msra.mxu0 0
        %1001 = vmatprep.subr.bf16.mxu0 0
        %1002 = vmatpush1.bf16.msra.mxu0 0
        %1003 = vmatprep.subr.bf16.mxu0 0
        %1004 = vmatpush1.bf16.msra.mxu0 0
        %1005 = vmatprep.subr.bf16.mxu0 0
        %1006 = vmatpush1.bf16.msra.mxu0 0
        %1007 = vmatprep.subr.bf16.mxu0 0
        %1008 = vmatpush1.bf16.msra.mxu0 0
        %1009 = vmatprep.subr.bf16.mxu0 0
        %1010 = vmatpush1.bf16.msra.mxu0 0
        %1011 = vmatprep.subr.bf16.mxu0 0
        %1012 = vmatpush1.bf16.msra.mxu0 0
        %1013 = vmatprep.subr.bf16.mxu0 0
        %1014 = vmatpush1.bf16.msra.mxu0 0
        %1015 = vmatprep.subr.bf16.mxu0 0
        %1016 = vmatpush1.bf16.msra.mxu0 0
        %1017 = vmatprep.subr.bf16.mxu0 0
        %1018 = vmatpush1.bf16.msra.mxu0 0
        %1019 = vmatprep.subr.bf16.mxu0 0
        %1020 = vmatpush1.bf16.msra.mxu0 0
        %1021 = vmatprep.mubr.bf16.mxu0 0
        %1022 = vmatmul.mubr.bf16.gmra.mrb[0].mxu0 %v984
        %v1023 = vpop.f32.mrb[0].mxu0
        %v1024 = vadd.f32 0.0, %v1023
        %v1025 = vpop.f32.mrb[0].mxu0
        %v1026 = vpop.f32.mrb[0].mxu0
        %v1027 = vpop.f32.mrb[0].mxu0
        %1028 = vdwg.mxu0
        %1030 = vrot.lane.b32.xlu0 %v800, 8
        %v1031 = vpop.permute.xlu0 %1030
        %1034 = vrot.lane.b32.xlu0 %v912, 16
        %v1035 = vpop.permute.xlu0 %1034
        %1038 = vrot.lane.b32.xlu0 %v1024, 24
        %v1039 = vpop.permute.xlu0 %1038
        %v1041 = vsel %vm584, %v688, %v1031
        %vm1042 = vcmask 130048
        %v1043 = vsel %vm1042, %v1041, %v1035
        %vm1044 = vcmask 195584
        %v1045 = vsel %vm1044, %v1043, %v1039
        %v1046 = vpack.c.bf16 %v1045, %v1045
        %v1047 = vld [vmem:[%s5] sm:$0xf]
        %v1048 = vld [vmem:[%s5 + $0x4] sm:$0xf]
        %v1049 = vld [vmem:[%s5 + $0x8] sm:$0xf]
        %v1050 = vld [vmem:[%s5 + $0xc] sm:$0xf]
        %v1051 = vld [vmem:[%s6] sm:$0x1]
        %v1053 = vlaneseq
        %v1054 = vshrl.u32 %v1053, 7
        %v1055 = vsub.s32 0, %v1054
        %v1056 = vrot.slane %v1051, %v1055
        %v1062 = vunpack.c.l.b16 %v1047
        %v1063 = vunpack.c.l.b16 %v1048
        %v1064 = vunpack.c.l.b16 %v1049
        %v1065 = vunpack.c.l.b16 %v1050
        %v1066 = vpack.c.b16 %v1063, %v1062
        %v1067 = vpack.c.b16 %v1065, %v1064
        %v1071 = vsel %vm478, %v1046, 0
        %1073 = vmatprep.subr.bf16.mxu0 0
        %1074 = vmatpush1.bf16.msra.mxu0 %v1066
        %1075 = vmatprep.subr.bf16.mxu0 0
        %1076 = vmatpush1.bf16.msra.mxu0 %v1067
        %1077 = vmatprep.subr.bf16.mxu0 0
        %1078 = vmatpush1.bf16.msra.mxu0 0
        %1079 = vmatprep.subr.bf16.mxu0 0
        %1080 = vmatpush1.bf16.msra.mxu0 0
        %1081 = vmatprep.subr.bf16.mxu0 0
        %1082 = vmatpush1.bf16.msra.mxu0 0
        %1083 = vmatprep.subr.bf16.mxu0 0
        %1084 = vmatpush1.bf16.msra.mxu0 0
        %1085 = vmatprep.subr.bf16.mxu0 0
        %1086 = vmatpush1.bf16.msra.mxu0 0
        %1087 = vmatprep.subr.bf16.mxu0 0
        %1088 = vmatpush1.bf16.msra.mxu0 0
        %1089 = vmatprep.subr.bf16.mxu0 0
        %1090 = vmatpush1.bf16.msra.mxu0 0
        %1091 = vmatprep.subr.bf16.mxu0 0
        %1092 = vmatpush1.bf16.msra.mxu0 0
        %1093 = vmatprep.subr.bf16.mxu0 0
        %1094 = vmatpush1.bf16.msra.mxu0 0
        %1095 = vmatprep.subr.bf16.mxu0 0
        %1096 = vmatpush1.bf16.msra.mxu0 0
        %1097 = vmatprep.subr.bf16.mxu0 0
        %1098 = vmatpush1.bf16.msra.mxu0 0
        %1099 = vmatprep.subr.bf16.mxu0 0
        %1100 = vmatpush1.bf16.msra.mxu0 0
        %1101 = vmatprep.subr.bf16.mxu0 0
        %1102 = vmatpush1.bf16.msra.mxu0 0
        %1103 = vmatprep.subr.bf16.mxu0 0
        %1104 = vmatpush1.bf16.msra.mxu0 0
        %1105 = vmatprep.mubr.bf16.mxu0 0
        %1106 = vmatmul.mubr.bf16.gmra.mrb[0].mxu0 %v1071
        %v1107 = vpop.f32.mrb[0].mxu0
        %v1108 = vadd.f32 %v1056, %v1107
        %v1109 = vpop.f32.mrb[0].mxu0
        %v1110 = vpop.f32.mrb[0].mxu0
        %v1111 = vpop.f32.mrb[0].mxu0
        %1112 = vdwg.mxu0
        %v1113 = vadd.f32 %v475, %v1108
        %v1114 = vld [vmem:[%s7] sm:$0x1]
        %v1115 = vld [vmem:[%s8] sm:$0x1]
        %v1116 = vsel %vm478, %v1113, 0.0
        %1117 = vadd.xlane.f32.xlu0 %v1116
        %v1118 = vpop.xlane.xlu0 %1117
        %v1119 = vmul.f32 %v1118, %v482
        %v1120 = vsub.f32 %v1113, %v1119
        %v1121 = vmul.f32 %v1120, %v1120
        %v1122 = vsel %vm478, %v1121, 0.0
        %1123 = vadd.xlane.f32.xlu0 %v1122
        %v1124 = vpop.xlane.xlu0 %1123
        %v1125 = vmul.f32 %v1124, %v482
        %v1126 = vadd.f32 %v1125, 1e-05
        %v1127 = vrsqrt.pop %v1126
        %v1128 = vmul.f32 %v1120, %v1127
        %v1130 = vlaneseq
        %v1131 = vshrl.u32 %v1130, 7
        %v1132 = vsub.s32 0, %v1131
        %v1133 = vrot.slane %v1114, %v1132
        %v1135 = vmul.f32 %v1128, %v1133
        %v1137 = vlaneseq
        %v1138 = vshrl.u32 %v1137, 7
        %v1139 = vsub.s32 0, %v1138
        %v1140 = vrot.slane %v1115, %v1139
        %v1142 = vadd.f32 %v1135, %v1140
        %v1143 = vpack.c.bf16 %v1142, %v1142
        %v1144 = vld [vmem:[%s9] sm:$0xf]
        %v1145 = vld [vmem:[%s9 + $0x4] sm:$0xf]
        %v1146 = vld [vmem:[%s9 + $0x8] sm:$0xf]
        %v1147 = vld [vmem:[%s9 + $0xc] sm:$0xf]
        %v1148 = vld [vmem:[%s10] sm:$0x1]
        %v1150 = vlaneseq
        %v1151 = vshrl.u32 %v1150, 7
        %v1152 = vsub.s32 0, %v1151
        %v1153 = vrot.slane %v1148, %v1152
        %v1159 = vunpack.c.l.b16 %v1144
        %v1160 = vunpack.c.l.b16 %v1145
        %v1161 = vunpack.c.l.b16 %v1146
        %v1162 = vunpack.c.l.b16 %v1147
        %v1163 = vpack.c.b16 %v1160, %v1159
        %v1164 = vpack.c.b16 %v1162, %v1161
        %v1168 = vsel %vm478, %v1143, 0
        %1170 = vmatprep.subr.bf16.mxu0 0
        %1171 = vmatpush1.bf16.msra.mxu0 %v1163
        %1172 = vmatprep.subr.bf16.mxu0 0
        %1173 = vmatpush1.bf16.msra.mxu0 %v1164
        %1174 = vmatprep.subr.bf16.mxu0 0
        %1175 = vmatpush1.bf16.msra.mxu0 0
        %1176 = vmatprep.subr.bf16.mxu0 0
        %1177 = vmatpush1.bf16.msra.mxu0 0
        %1178 = vmatprep.subr.bf16.mxu0 0
        %1179 = vmatpush1.bf16.msra.mxu0 0
        %1180 = vmatprep.subr.bf16.mxu0 0
        %1181 = vmatpush1.bf16.msra.mxu0 0
        %1182 = vmatprep.subr.bf16.mxu0 0
        %1183 = vmatpush1.bf16.msra.mxu0 0
        %1184 = vmatprep.subr.bf16.mxu0 0
        %1185 = vmatpush1.bf16.msra.mxu0 0
        %1186 = vmatprep.subr.bf16.mxu0 0
        %1187 = vmatpush1.bf16.msra.mxu0 0
        %1188 = vmatprep.subr.bf16.mxu0 0
        %1189 = vmatpush1.bf16.msra.mxu0 0
        %1190 = vmatprep.subr.bf16.mxu0 0
        %1191 = vmatpush1.bf16.msra.mxu0 0
        %1192 = vmatprep.subr.bf16.mxu0 0
        %1193 = vmatpush1.bf16.msra.mxu0 0
        %1194 = vmatprep.subr.bf16.mxu0 0
        %1195 = vmatpush1.bf16.msra.mxu0 0
        %1196 = vmatprep.subr.bf16.mxu0 0
        %1197 = vmatpush1.bf16.msra.mxu0 0
        %1198 = vmatprep.subr.bf16.mxu0 0
        %1199 = vmatpush1.bf16.msra.mxu0 0
        %1200 = vmatprep.subr.bf16.mxu0 0
        %1201 = vmatpush1.bf16.msra.mxu0 0
        %1202 = vmatprep.mubr.bf16.mxu0 0
        %1203 = vmatmul.mubr.bf16.gmra.mrb[0].mxu0 %v1168
        %v1204 = vpop.f32.mrb[0].mxu0
        %v1205 = vadd.f32 %v1153, %v1204
        %v1206 = vpop.f32.mrb[0].mxu0
        %v1207 = vpop.f32.mrb[0].mxu0
        %v1208 = vpop.f32.mrb[0].mxu0
        %1209 = vdwg.mxu0
        %v1210 = vmul.f32 %v1205, 0.5
        %v1211 = vmul.f32 %v1205, 0.70710677
        %v1212 = vand.u32 2147483647, %v1211
        %v1213 = vmul.f32 %v1212, 0.3275911
        %v1214 = vadd.f32 %v1213, 1.0
        %v1215 = vrcp.pop %v1214
        %v1216 = vmul.f32 1.0, %v1215
        %v1217 = vmul.f32 %v1216, 1.0614054
        %v1218 = vadd.f32 %v1217, -1.4531521
        %v1219 = vmul.f32 %v1218, %v1216
        %v1220 = vadd.f32 %v1219, 1.4214138
        %v1221 = vmul.f32 %v1220, %v1216
        %v1222 = vadd.f32 %v1221, -0.28449672
        %v1223 = vmul.f32 %v1222, %v1216
        %v1224 = vadd.f32 %v1223, 0.2548296
        %v1225 = vmul.f32 %v1224, %v1216
        %v1226 = vmul.f32 %v1212, %v1212
        %v1227 = vsub.f32 0.0, %v1226
        %v1228 = vmul.f32 %v1227, 1.442695
        %v1229 = vpow.pop %v1228
        %v1230 = vmul.f32 %v1225, %v1229
        %v1231 = vsub.f32 1.0, %v1230
        %vm1232 = vcmp.ge.f32.partialorder %v1211, 0.0
        %v1233 = vsub.f32 0.0, %v1231
        %v1234 = vsel %vm1232, %v1231, %v1233
        %v1235 = vadd.f32 %v1234, 1.0
        %v1236 = vmul.f32 %v1210, %v1235
        %v1237 = vpack.c.bf16 %v1236, %v1236
        %v1238 = vld [vmem:[%s11] sm:$0xf]
        %v1239 = vld [vmem:[%s11 + $0x4] sm:$0xf]
        %v1240 = vld [vmem:[%s11 + $0x8] sm:$0xf]
        %v1241 = vld [vmem:[%s11 + $0xc] sm:$0xf]
        %v1242 = vld [vmem:[%s11 + $0x10] sm:$0xf]
        %v1243 = vld [vmem:[%s11 + $0x14] sm:$0xf]
        %v1244 = vld [vmem:[%s11 + $0x18] sm:$0xf]
        %v1245 = vld [vmem:[%s11 + $0x1c] sm:$0xf]
        %v1246 = vld [vmem:[%s11 + $0x20] sm:$0xf]
        %v1247 = vld [vmem:[%s11 + $0x24] sm:$0xf]
        %v1248 = vld [vmem:[%s11 + $0x28] sm:$0xf]
        %v1249 = vld [vmem:[%s11 + $0x2c] sm:$0xf]
        %v1250 = vld [vmem:[%s11 + $0x30] sm:$0xf]
        %v1251 = vld [vmem:[%s11 + $0x34] sm:$0xf]
        %v1252 = vld [vmem:[%s11 + $0x38] sm:$0xf]
        %v1253 = vld [vmem:[%s11 + $0x3c] sm:$0xf]
        %v1254 = vld [vmem:[%s12] sm:$0x1]
        %v1256 = vlaneseq
        %v1257 = vshrl.u32 %v1256, 7
        %v1258 = vsub.s32 0, %v1257
        %v1259 = vrot.slane %v1254, %v1258
        %v1277 = vunpack.c.l.b16 %v1238
        %v1278 = vunpack.c.l.b16 %v1239
        %v1279 = vunpack.c.l.b16 %v1240
        %v1280 = vunpack.c.l.b16 %v1241
        %v1281 = vunpack.c.l.b16 %v1242
        %v1282 = vunpack.c.l.b16 %v1243
        %v1283 = vunpack.c.l.b16 %v1244
        %v1284 = vunpack.c.l.b16 %v1245
        %v1285 = vunpack.c.l.b16 %v1246
        %v1286 = vunpack.c.l.b16 %v1247
        %v1287 = vunpack.c.l.b16 %v1248
        %v1288 = vunpack.c.l.b16 %v1249
        %v1289 = vunpack.c.l.b16 %v1250
        %v1290 = vunpack.c.l.b16 %v1251
        %v1291 = vunpack.c.l.b16 %v1252
        %v1292 = vunpack.c.l.b16 %v1253
        %v1293 = vpack.c.b16 %v1278, %v1277
        %v1294 = vpack.c.b16 %v1280, %v1279
        %v1295 = vpack.c.b16 %v1282, %v1281
        %v1296 = vpack.c.b16 %v1284, %v1283
        %v1297 = vpack.c.b16 %v1286, %v1285
        %v1298 = vpack.c.b16 %v1288, %v1287
        %v1299 = vpack.c.b16 %v1290, %v1289
        %v1300 = vpack.c.b16 %v1292, %v1291
        %1309 = vmatprep.subr.bf16.mxu0 0
        %1310 = vmatpush1.bf16.msra.mxu0 %v1293
        %1311 = vmatprep.subr.bf16.mxu0 0
        %1312 = vmatpush1.bf16.msra.mxu0 %v1294
        %1313 = vmatprep.subr.bf16.mxu0 0
        %1314 = vmatpush1.bf16.msra.mxu0 %v1295
        %1315 = vmatprep.subr.bf16.mxu0 0
        %1316 = vmatpush1.bf16.msra.mxu0 %v1296
        %1317 = vmatprep.subr.bf16.mxu0 0
        %1318 = vmatpush1.bf16.msra.mxu0 %v1297
        %1319 = vmatprep.subr.bf16.mxu0 0
        %1320 = vmatpush1.bf16.msra.mxu0 %v1298
        %1321 = vmatprep.subr.bf16.mxu0 0
        %1322 = vmatpush1.bf16.msra.mxu0 %v1299
        %1323 = vmatprep.subr.bf16.mxu0 0
        %1324 = vmatpush1.bf16.msra.mxu0 %v1300
        %1325 = vmatprep.subr.bf16.mxu0 0
        %1326 = vmatpush1.bf16.msra.mxu0 0
        %1327 = vmatprep.subr.bf16.mxu0 0
        %1328 = vmatpush1.bf16.msra.mxu0 0
        %1329 = vmatprep.subr.bf16.mxu0 0
        %1330 = vmatpush1.bf16.msra.mxu0 0
        %1331 = vmatprep.subr.bf16.mxu0 0
        %1332 = vmatpush1.bf16.msra.mxu0 0
        %1333 = vmatprep.subr.bf16.mxu0 0
        %1334 = vmatpush1.bf16.msra.mxu0 0
        %1335 = vmatprep.subr.bf16.mxu0 0
        %1336 = vmatpush1.bf16.msra.mxu0 0
        %1337 = vmatprep.subr.bf16.mxu0 0
        %1338 = vmatpush1.bf16.msra.mxu0 0
        %1339 = vmatprep.subr.bf16.mxu0 0
        %1340 = vmatpush1.bf16.msra.mxu0 0
        %1341 = vmatprep.mubr.bf16.mxu0 0
        %1342 = vmatmul.mubr.bf16.gmra.mrb[0].mxu0 %v1237
        %v1343 = vpop.f32.mrb[0].mxu0
        %v1344 = vadd.f32 %v1259, %v1343
        %v1345 = vpop.f32.mrb[0].mxu0
        %v1346 = vpop.f32.mrb[0].mxu0
        %v1347 = vpop.f32.mrb[0].mxu0
        %1348 = vdwg.mxu0
        %v1349 = vadd.f32 %v1113, %v1344
        %1350 = vst.msk [vmem:[%s462] sm:$0xff] %vm478, %v1349
        %s1351 = sand.u32 %s318, 1
        %s1352 = scalar_lea.sflag [#allocation3], %s1351
        %s1353 = sand.u32 %s318, 1
        %s1354 = smul.addr %s1353, 8
        %s1355 = scalar_lea.vmem [#allocation2], %s1354
        %s1356 = sand.u32 %s344, 1
        %s1357 = scalar_lea.sflag [#allocation5], %s1356
        %s1358 = sand.u32 %s344, 1
        %s1359 = smul.addr %s1358, 32
        %s1360 = scalar_lea.vmem [#allocation4], %s1359
        // Predicated region
        $region73: #{tpu_custom_call.1} parent=71 // pred_check
          %p1361 = pneg %p328
        $region74: #{tpu_custom_call.1} parent=71 // pred_check_branch
          %1363 = sbr.rel (%p1361) target = $region76
        $region75: #{tpu_custom_call.1} parent=71 // pred_region
          %s1365 = ssub.s32 128, 128
          %1366 = vsyncadd %s1352, %s1365
          %s1367 = smul.addr %s32, 128
          %s1368 = scalar_lea.hbm %s13, %s1367
          %s1370 = sshll.u32 %s1355, 4
          %s1371 = int_to_ptr.vmem [resolvable:$true] %s1370
          %1373 = dma.vmem_to_hbm [thread:$0]  %s1371, 128, %s1368, %s1352
        $region76: #{tpu_custom_call.1} parent=71 // pred_fallthru
          _
        // Predicated region
        $region77: #{tpu_custom_call.1} parent=71 // pred_check
          %p1374 = pneg %p354
        $region78: #{tpu_custom_call.1} parent=71 // pred_check_branch
          %1376 = sbr.rel (%p1374) target = $region80
        $region79: #{tpu_custom_call.1} parent=71 // pred_region
          %s1378 = ssub.s32 512, 512
          %1379 = vsyncadd %s1357, %s1378
          %s1380 = smul.addr %s32, 4
          %s1381 = smul.addr %s1380, 128
          %s1382 = scalar_lea.hbm %s14, %s1381
          %s1383 = sshll.u32 %s1360, 4
          %s1384 = int_to_ptr.vmem [resolvable:$true] %s1383
          %1389 = dma.vmem_to_hbm [thread:$0]  %s1384, 512, %s1382, %s1357, 128, 128, 8
        $region80: #{tpu_custom_call.1} parent=71 // pred_fallthru
          _
      $region72: #{tpu_custom_call.1} parent=5 // pred_fallthru
        _
      %p1390 = scmp.le.s32.totalorder 2, %s27
      // Predicated region
      $region81: #{tpu_custom_call.1} parent=5 // pred_check
        %p1391 = pneg %p1390
      $region82: #{tpu_custom_call.1} parent=5 // pred_check_branch
        %1393 = sbr.rel (%p1391) target = $region84
      $region83: #{tpu_custom_call.1} parent=5 // pred_region
        %s1394 = ssub.s32 %s27, 2
        // Predicated region
        $region85: #{tpu_custom_call.1} parent=83 // pred_check
          %p1395 = pneg %p334
        $region86: #{tpu_custom_call.1} parent=83 // pred_check_branch
          %1397 = sbr.rel (%p1395) target = $region88
        $region87: #{tpu_custom_call.1} parent=83 // pred_region
          %s1398 = sand.u32 %s319, 1
          %s1399 = scalar_lea.sflag [#allocation3], %s1398
          %s1400 = sand.u32 %s319, 1
          %s1401 = smul.addr %s1400, 8
          %s1402 = scalar_lea.vmem [#allocation2], %s1401
          %1403 = dma.done %s1399, 128
        $region88: #{tpu_custom_call.1} parent=83 // pred_fallthru
          _
        // Predicated region
        $region89: #{tpu_custom_call.1} parent=83 // pred_check
          %p1404 = pneg %p360
        $region90: #{tpu_custom_call.1} parent=83 // pred_check_branch
          %1406 = sbr.rel (%p1404) target = $region92
        $region91: #{tpu_custom_call.1} parent=83 // pred_region
          %s1407 = sand.u32 %s345, 1
          %s1408 = scalar_lea.sflag [#allocation5], %s1407
          %s1409 = sand.u32 %s345, 1
          %s1410 = smul.addr %s1409, 32
          %s1411 = scalar_lea.vmem [#allocation4], %s1410
          %1412 = dma.done %s1408, 512
        $region92: #{tpu_custom_call.1} parent=83 // pred_fallthru
          _
      $region84: #{tpu_custom_call.1} parent=5 // pred_fallthru
        _
    $region6: #{tpu_custom_call.1} parent=1 // loop_footer
      %s31 = sadd.s32 1, %s27
    $region7: #{tpu_custom_call.1} parent=1 // loop_footer_branch
      %26 = sbr.rel target = $region3
    $region8: #{tpu_custom_call.1} parent=1 // loop_exit
      _
    %1413 = vsyncpa [#allocation3], 1
    %s1414 = scalar_lea.sflag [#allocation3], 1
    %1415 = vsyncpa %s1414, 1
    %1416 = vsyncpa [#allocation5], 1
    %s1417 = scalar_lea.sflag [#allocation5], 1
    %1418 = vsyncpa %s1417, 1

</llo_original>
